<compile_context>
chip_gen: v7x
topology: tpu7x:2x2x1
jax: 0.10.0
libtpu: 0.0.40
codegen_flags: <defaults>
</compile_context>

<pallas_src>
import functools

import jax
import jax.numpy as jnp
from jax.experimental import pallas as pl
from jax.experimental.pallas import tpu as pltpu

LANE = 128   # TPU lane width: every channel dim is padded to this
SUB = 8      # sublane multiple (node / graph row padding)


def _round_up(n, m):
    return (n + m - 1) // m * m


def _spec(shape):
    n = len(shape)
    return pl.BlockSpec(shape, lambda *args, _n=n: (0,) * _n)


def _pad2(x, rows, cols):
    out = jnp.zeros((rows, cols), x.dtype)
    return out.at[:x.shape[0], :x.shape[1]].set(x)


# ---------------------------------------------------------------------------
# Single fused kernel: atom-encode -> n x GraphConv(+ReLU,+BN) -> pool -> MLP
# ---------------------------------------------------------------------------
def _fused_forward_kernel(*refs, n_layers, n_real, n_pad, eps):
    onehot_ref, emb_ref, a_ref, p_ref = refs[0:4]
    conv_refs = refs[4:4 + 3 * n_layers]
    (gamma_ref, beta_ref, w1_ref, b1_ref,
     w2_ref, b2_ref, o_ref) = refs[4 + 3 * n_layers:]

    a = a_ref[...]                                            # (Np, Np)

    # AtomEncoder: sum of categorical embeddings == one-hot @ concat(tables).
    x = jnp.dot(onehot_ref[...], emb_ref[...],
                preferred_element_type=jnp.float32)           # (Np, 128)

    # Rows >= n_real are padding; exclude them from BatchNorm statistics.
    if n_pad > n_real:
        node_mask = (jax.lax.broadcasted_iota(jnp.int32, x.shape, 0)
                     < n_real).astype(jnp.float32)
    else:
        node_mask = None
    inv_n = 1.0 / float(n_real)

    for i in range(n_layers):
        w_rel = conv_refs[3 * i][...]                         # (128, 128)
        b_rel = conv_refs[3 * i + 1][...]                     # (1, 128)
        w_root = conv_refs[3 * i + 2][...]                    # (128, 128)

        # GraphConv (aggr='add'):  h = (A@x)@Wrel + brel + x@Wroot
        # Two K=128 MXU dots — no in-kernel concatenation / VMEM copy.
        agg = jnp.dot(a, x, preferred_element_type=jnp.float32)
        h = (jnp.dot(agg, w_rel, preferred_element_type=jnp.float32)
             + jnp.dot(x, w_root, preferred_element_type=jnp.float32)
             + b_rel)
        h = jnp.maximum(h, 0.0)                               # F.relu

        if i != n_layers - 1:
            # Shared BatchNorm, training-mode batch stats, one-pass moments.
            hm = h if node_mask is None else h * node_mask
            m = jnp.sum(hm, axis=0, keepdims=True) * inv_n
            m2 = jnp.sum(hm * hm, axis=0, keepdims=True) * inv_n
            var = m2 - m * m
            scale = gamma_ref[...] * jax.lax.rsqrt(var + eps)
            shift = beta_ref[...] - m * scale                 # fold mean in
            h = h * scale + shift
        x = h

    # global mean/add pool as a matmul with the pooling matrix P.
    pooled = jnp.dot(p_ref[...], x, preferred_element_type=jnp.float32)
    h1 = jnp.maximum(
        jnp.dot(pooled, w1_ref[...], preferred_element_type=jnp.float32)
        + b1_ref[...], 0.0)                                   # relu(linear1)
    # linear2 (16 -> 1): VPU multiply + lane reduction (no 1-wide matmul).
    out = jnp.sum(h1 * w2_ref[...], axis=1, keepdims=True)    # (Gp, 1)
    # Lane-dense store; the real result is column 0 (sliced by the wrapper).
    o_ref[...] = jnp.broadcast_to(out, o_ref.shape) + b2_ref[...]


# ---------------------------------------------------------------------------
# Host wrapper: pad / repack operands and launch the single fused kernel.
# ---------------------------------------------------------------------------
def gcn_net_forward(x_atoms, A, P, params, *, vocab_sizes, eps=1e-5):
    N = A.shape[0]
    G = P.shape[0]
    n_layers = len(params["conv"])
    N_pad = _round_up(N, SUB)
    G_pad = _round_up(G, SUB)
    VK = _round_up(sum(vocab_sizes), LANE)

    # One-hot over the concatenated vocabularies (tiny; fused by XLA).
    offs, acc = [], 0
    for v in vocab_sizes:
        offs.append(acc)
        acc += v
    idx = x_atoms + jnp.asarray(offs, jnp.int32)[None, :]             # (N, F)
    onehot = jax.nn.one_hot(idx, VK, dtype=jnp.float32).sum(axis=1)   # (N, VK)
    onehot = _pad2(onehot, N_pad, VK)

    emb_all = jnp.zeros((VK, LANE), jnp.float32)
    r = 0
    for tbl in params["emb_tables"]:
        v, c = tbl.shape
        emb_all = emb_all.at[r:r + v, :c].set(tbl)
        r += v

    A_p = _pad2(A, N_pad, N_pad)
    P_p = _pad2(P, G_pad, N_pad)

    conv_in = []
    for (w_rel, b_rel, w_root) in params["conv"]:
        conv_in += [_pad2(w_rel, LANE, LANE),      # lin_rel weight (on A@x)
                    _pad2(b_rel, 1, LANE),         # lin_rel bias
                    _pad2(w_root, LANE, LANE)]     # lin_root weight (on x)

    gamma_p = _pad2(params["bn_gamma"], 1, LANE)
    beta_p = _pad2(params["bn_beta"], 1, LANE)
    w1_p = _pad2(params["w1"], LANE, LANE)
    b1_p = _pad2(params["b1"], 1, LANE)
    w2row = _pad2(params["w2"].T, 1, LANE)
    b2_p = jnp.broadcast_to(params["b2"].reshape(1, 1), (1, LANE))

    inputs = [onehot, emb_all, A_p, P_p] + conv_in + [
        gamma_p, beta_p, w1_p, b1_p, w2row, b2_p]

    kernel = functools.partial(_fused_forward_kernel, n_layers=n_layers,
                               n_real=N, n_pad=N_pad, eps=eps)
    out_pad = pl.pallas_call(
        kernel,
        out_shape=jax.ShapeDtypeStruct((G_pad, LANE), jnp.float32),
        grid=(1,),
        in_specs=[_spec(x.shape) for x in inputs],
        out_specs=_spec((G_pad, LANE)),
        compiler_params=pltpu.CompilerParams(
            dimension_semantics=("arbitrary",)),
    )(*inputs)
    return out_pad[:G, :1]


# ---------------------------------------------------------------------------
# Plain-JAX reference (unpadded) for a correctness check.
# ---------------------------------------------------------------------------
def _reference_forward(x_atoms, A, P, params, eps=1e-5):
    x = jnp.zeros((x_atoms.shape[0], params["emb_tables"][0].shape[1]),
                  jnp.float32)
    for f, tbl in enumerate(params["emb_tables"]):
        x = x + tbl[x_atoms[:, f]]
    n_layers = len(params["conv"])
    for i, (w_rel, b_rel, w_root) in enumerate(params["conv"]):
        h = (A @ x) @ w_rel + b_rel + x @ w_root
        h = jnp.maximum(h, 0.0)
        if i != n_layers - 1:
            m = jnp.mean(h, axis=0, keepdims=True)
            v = jnp.mean((h - m) ** 2, axis=0, keepdims=True)
            h = ((h - m) * jax.lax.rsqrt(v + eps) * params["bn_gamma"]
                 + params["bn_beta"])
        x = h
    pooled = P @ x
    h1 = jnp.maximum(pooled @ params["w1"] + params["b1"], 0.0)
    return h1 @ params["w2"] + params["b2"]


if __name__ == "__main__":
    # Model hyper-parameters (small, consistent with the module's __init__).
    in_channels = 32          # AtomEncoder emb_dim
    hidden_out_channel = 32
    out_channel = 32
    number_hidden_layers = 1  # -> 3 GraphConv layers total
    k = 1
    pool_layer = "mean"

    # Synthetic graph batch: 2 graphs x 8 nodes = 16 nodes, ring edges.
    G, N_per = 2, 8
    N = G * N_per
    num_atom_feats = 3
    vocab_sizes = (5, 4, 3)

    key = jax.random.PRNGKey(0)
    keys = iter(jax.random.split(key, 32))

    # data.x : categorical atom features [N, 3]
    x_atoms = jax.random.randint(next(keys), (N, num_atom_feats), 0,
                                 min(vocab_sizes)).astype(jnp.int32)

    # data.edge_index : bidirectional ring within each graph
    src_list, dst_list = [], []
    for g in range(G):
        for i in range(N_per):
            a = g * N_per + i
            b = g * N_per + (i + 1) % N_per
            src_list += [a, b]
            dst_list += [b, a]
    edge_index = jnp.array([src_list, dst_list], dtype=jnp.int32)

    # Dense adjacency for "add" aggregation: A[dst, src] += 1
    A = jnp.zeros((N, N), jnp.float32).at[edge_index[1], edge_index[0]].add(1.0)

    # data.batch : graph id per node ; pooling matrix P [G, N]
    batch = jnp.repeat(jnp.arange(G, dtype=jnp.int32), N_per)
    onehot_g = (batch[None, :] ==
                jnp.arange(G, dtype=jnp.int32)[:, None]).astype(jnp.float32)
    counts = jnp.sum(onehot_g, axis=1, keepdims=True)
    P = onehot_g / counts if pool_layer == "mean" else onehot_g

    def init(shape, scale=0.1):
        return (scale * jax.random.normal(next(keys), shape)).astype(jnp.float32)

    emb_tables = [init((v, in_channels)) for v in vocab_sizes]

    conv_dims = [(in_channels, hidden_out_channel)]
    conv_dims += [(hidden_out_channel, hidden_out_channel)] * number_hidden_layers
    conv_dims += [(hidden_out_channel, out_channel)]
    conv_params = [(init((ci, co)),       # lin_rel weight (stored transposed)
                    init((1, co)),        # lin_rel bias
                    init((ci, co)))       # lin_root weight (no bias)
                   for ci, co in conv_dims]

    params = dict(
        emb_tables=emb_tables,
        conv=conv_params,
        bn_gamma=jnp.ones((1, hidden_out_channel), jnp.float32),
        bn_beta=jnp.zeros((1, hidden_out_channel), jnp.float32),
        w1=init((k * out_channel, 16)),
        b1=init((1, 16)),
        w2=init((16, 1)),
        b2=init((1, 1)),
    )

    fwd = jax.jit(functools.partial(gcn_net_forward, vocab_sizes=vocab_sizes))
    out = jax.block_until_ready(fwd(x_atoms, A, P, params))
    assert out.shape == (G, 1) and out.dtype == jnp.float32
    assert bool(jnp.all(jnp.isfinite(out)))

    ref = jax.block_until_ready(_reference_forward(x_atoms, A, P, params))
    assert jnp.allclose(out, ref, atol=5e-2, rtol=5e-2), (out, ref)
    print("KERNEL_OK")
</pallas_src>

<mosaic_0001>
module attributes {stable_mosaic.version = 11 : i64} {
  func.func @_fused_forward_kernel(%arg0: i32, %arg1: memref<16x128xf32, #tpu.memory_space<vmem>>, %arg2: memref<128x128xf32, #tpu.memory_space<vmem>>, %arg3: memref<16x16xf32, #tpu.memory_space<vmem>>, %arg4: memref<8x16xf32, #tpu.memory_space<vmem>>, %arg5: memref<128x128xf32, #tpu.memory_space<vmem>>, %arg6: memref<1x128xf32, #tpu.memory_space<vmem>>, %arg7: memref<128x128xf32, #tpu.memory_space<vmem>>, %arg8: memref<128x128xf32, #tpu.memory_space<vmem>>, %arg9: memref<1x128xf32, #tpu.memory_space<vmem>>, %arg10: memref<128x128xf32, #tpu.memory_space<vmem>>, %arg11: memref<128x128xf32, #tpu.memory_space<vmem>>, %arg12: memref<1x128xf32, #tpu.memory_space<vmem>>, %arg13: memref<128x128xf32, #tpu.memory_space<vmem>>, %arg14: memref<1x128xf32, #tpu.memory_space<vmem>>, %arg15: memref<1x128xf32, #tpu.memory_space<vmem>>, %arg16: memref<128x128xf32, #tpu.memory_space<vmem>>, %arg17: memref<1x128xf32, #tpu.memory_space<vmem>>, %arg18: memref<1x128xf32, #tpu.memory_space<vmem>>, %arg19: memref<1x128xf32, #tpu.memory_space<vmem>>, %arg20: memref<8x128xf32, #tpu.memory_space<vmem>>) attributes {dimension_semantics = [#tpu.dimension_semantics<arbitrary>], iteration_bounds = array<i64: 1>, scalar_prefetch = 0 : i64, scratch_operands = 0 : i64, tpu.core_type = #tpu.core_type<tc>, window_params = [{pipeline_mode = #tpu.pipeline_mode<synchronous>, transform_indices = @transform_0, window_bounds = array<i64: 16, 128>}, {pipeline_mode = #tpu.pipeline_mode<synchronous>, transform_indices = @transform_1, window_bounds = array<i64: 128, 128>}, {pipeline_mode = #tpu.pipeline_mode<synchronous>, transform_indices = @transform_2, window_bounds = array<i64: 16, 16>}, {pipeline_mode = #tpu.pipeline_mode<synchronous>, transform_indices = @transform_3, window_bounds = array<i64: 8, 16>}, {pipeline_mode = #tpu.pipeline_mode<synchronous>, transform_indices = @transform_4, window_bounds = array<i64: 128, 128>}, {pipeline_mode = #tpu.pipeline_mode<synchronous>, transform_indices = @transform_5, window_bounds = array<i64: 1, 128>}, {pipeline_mode = #tpu.pipeline_mode<synchronous>, transform_indices = @transform_6, window_bounds = array<i64: 128, 128>}, {pipeline_mode = #tpu.pipeline_mode<synchronous>, transform_indices = @transform_7, window_bounds = array<i64: 128, 128>}, {pipeline_mode = #tpu.pipeline_mode<synchronous>, transform_indices = @transform_8, window_bounds = array<i64: 1, 128>}, {pipeline_mode = #tpu.pipeline_mode<synchronous>, transform_indices = @transform_9, window_bounds = array<i64: 128, 128>}, {pipeline_mode = #tpu.pipeline_mode<synchronous>, transform_indices = @transform_10, window_bounds = array<i64: 128, 128>}, {pipeline_mode = #tpu.pipeline_mode<synchronous>, transform_indices = @transform_11, window_bounds = array<i64: 1, 128>}, {pipeline_mode = #tpu.pipeline_mode<synchronous>, transform_indices = @transform_12, window_bounds = array<i64: 128, 128>}, {pipeline_mode = #tpu.pipeline_mode<synchronous>, transform_indices = @transform_13, window_bounds = array<i64: 1, 128>}, {pipeline_mode = #tpu.pipeline_mode<synchronous>, transform_indices = @transform_14, window_bounds = array<i64: 1, 128>}, {pipeline_mode = #tpu.pipeline_mode<synchronous>, transform_indices = @transform_15, window_bounds = array<i64: 128, 128>}, {pipeline_mode = #tpu.pipeline_mode<synchronous>, transform_indices = @transform_16, window_bounds = array<i64: 1, 128>}, {pipeline_mode = #tpu.pipeline_mode<synchronous>, transform_indices = @transform_17, window_bounds = array<i64: 1, 128>}, {pipeline_mode = #tpu.pipeline_mode<synchronous>, transform_indices = @transform_18, window_bounds = array<i64: 1, 128>}, {pipeline_mode = #tpu.pipeline_mode<synchronous>, transform_indices = @transform_19, window_bounds = array<i64: 8, 128>}]} {
    %c0 = arith.constant 0 : index
    %c0_0 = arith.constant 0 : index
    %0 = vector.load %arg3[%c0, %c0_0] : memref<16x16xf32, #tpu.memory_space<vmem>>, vector<16x16xf32>
    %c0_1 = arith.constant 0 : index
    %c0_2 = arith.constant 0 : index
    %1 = vector.load %arg1[%c0_1, %c0_2] : memref<16x128xf32, #tpu.memory_space<vmem>>, vector<16x128xf32>
    %c0_3 = arith.constant 0 : index
    %c0_4 = arith.constant 0 : index
    %2 = vector.load %arg2[%c0_3, %c0_4] : memref<128x128xf32, #tpu.memory_space<vmem>>, vector<128x128xf32>
    %cst = arith.constant dense<0.000000e+00> : vector<16x128xf32>
    %3 = tpu.matmul %1, %2, %cst {dimension_numbers = #tpu.dot_dimension_numbers<[1], [0], [0], [1], [0, 0, 1, 1], [], []>} : vector<16x128xf32>, vector<128x128xf32>, vector<16x128xf32> -> vector<16x128xf32>
    %c0_5 = arith.constant 0 : index
    %c0_6 = arith.constant 0 : index
    %4 = vector.load %arg5[%c0_5, %c0_6] : memref<128x128xf32, #tpu.memory_space<vmem>>, vector<128x128xf32>
    %c0_7 = arith.constant 0 : index
    %c0_8 = arith.constant 0 : index
    %5 = vector.load %arg6[%c0_7, %c0_8] : memref<1x128xf32, #tpu.memory_space<vmem>>, vector<1x128xf32>
    %c0_9 = arith.constant 0 : index
    %c0_10 = arith.constant 0 : index
    %6 = vector.load %arg7[%c0_9, %c0_10] : memref<128x128xf32, #tpu.memory_space<vmem>>, vector<128x128xf32>
    %cst_11 = arith.constant dense<0.000000e+00> : vector<16x128xf32>
    %7 = tpu.matmul %0, %3, %cst_11 {dimension_numbers = #tpu.dot_dimension_numbers<[1], [0], [0], [1], [0, 0, 1, 1], [], []>} : vector<16x16xf32>, vector<16x128xf32>, vector<16x128xf32> -> vector<16x128xf32>
    %cst_12 = arith.constant dense<0.000000e+00> : vector<16x128xf32>
    %8 = tpu.matmul %7, %4, %cst_12 {dimension_numbers = #tpu.dot_dimension_numbers<[1], [0], [0], [1], [0, 0, 1, 1], [], []>} : vector<16x128xf32>, vector<128x128xf32>, vector<16x128xf32> -> vector<16x128xf32>
    %cst_13 = arith.constant dense<0.000000e+00> : vector<16x128xf32>
    %9 = tpu.matmul %3, %6, %cst_13 {dimension_numbers = #tpu.dot_dimension_numbers<[1], [0], [0], [1], [0, 0, 1, 1], [], []>} : vector<16x128xf32>, vector<128x128xf32>, vector<16x128xf32> -> vector<16x128xf32>
    %10 = arith.addf %8, %9 : vector<16x128xf32>
    %11 = vector.broadcast %5 : vector<1x128xf32> to vector<16x128xf32>
    %12 = arith.addf %10, %11 : vector<16x128xf32>
    %cst_14 = arith.constant 0.000000e+00 : f32
    %13 = vector.broadcast %cst_14 : f32 to vector<16x128xf32>
    %14 = arith.maximumf %12, %13 : vector<16x128xf32>
    %cst_15 = arith.constant dense<0.000000e+00> : vector<128xf32>
    %15 = vector.multi_reduction <add>, %14, %cst_15 [0] : vector<16x128xf32> to vector<128xf32>
    %16 = vector.shape_cast %15 : vector<128xf32> to vector<1x128xf32>
    %cst_16 = arith.constant 6.250000e-02 : f32
    %17 = vector.broadcast %cst_16 : f32 to vector<1x128xf32>
    %18 = arith.mulf %16, %17 : vector<1x128xf32>
    %19 = arith.mulf %14, %14 : vector<16x128xf32>
    %cst_17 = arith.constant dense<0.000000e+00> : vector<128xf32>
    %20 = vector.multi_reduction <add>, %19, %cst_17 [0] : vector<16x128xf32> to vector<128xf32>
    %21 = vector.shape_cast %20 : vector<128xf32> to vector<1x128xf32>
    %cst_18 = arith.constant 6.250000e-02 : f32
    %22 = vector.broadcast %cst_18 : f32 to vector<1x128xf32>
    %23 = arith.mulf %21, %22 : vector<1x128xf32>
    %24 = arith.mulf %18, %18 : vector<1x128xf32>
    %25 = arith.subf %23, %24 : vector<1x128xf32>
    %c0_19 = arith.constant 0 : index
    %c0_20 = arith.constant 0 : index
    %26 = vector.load %arg14[%c0_19, %c0_20] : memref<1x128xf32, #tpu.memory_space<vmem>>, vector<1x128xf32>
    %cst_21 = arith.constant 9.99999974E-6 : f32
    %27 = vector.broadcast %cst_21 : f32 to vector<1x128xf32>
    %28 = arith.addf %25, %27 : vector<1x128xf32>
    %29 = math.rsqrt %28 : vector<1x128xf32>
    %30 = arith.mulf %26, %29 : vector<1x128xf32>
    %c0_22 = arith.constant 0 : index
    %c0_23 = arith.constant 0 : index
    %31 = vector.load %arg15[%c0_22, %c0_23] : memref<1x128xf32, #tpu.memory_space<vmem>>, vector<1x128xf32>
    %32 = arith.mulf %18, %30 : vector<1x128xf32>
    %33 = arith.subf %31, %32 : vector<1x128xf32>
    %34 = vector.broadcast %30 : vector<1x128xf32> to vector<16x128xf32>
    %35 = arith.mulf %14, %34 : vector<16x128xf32>
    %36 = vector.broadcast %33 : vector<1x128xf32> to vector<16x128xf32>
    %37 = arith.addf %35, %36 : vector<16x128xf32>
    %c0_24 = arith.constant 0 : index
    %c0_25 = arith.constant 0 : index
    %38 = vector.load %arg8[%c0_24, %c0_25] : memref<128x128xf32, #tpu.memory_space<vmem>>, vector<128x128xf32>
    %c0_26 = arith.constant 0 : index
    %c0_27 = arith.constant 0 : index
    %39 = vector.load %arg9[%c0_26, %c0_27] : memref<1x128xf32, #tpu.memory_space<vmem>>, vector<1x128xf32>
    %c0_28 = arith.constant 0 : index
    %c0_29 = arith.constant 0 : index
    %40 = vector.load %arg10[%c0_28, %c0_29] : memref<128x128xf32, #tpu.memory_space<vmem>>, vector<128x128xf32>
    %cst_30 = arith.constant dense<0.000000e+00> : vector<16x128xf32>
    %41 = tpu.matmul %0, %37, %cst_30 {dimension_numbers = #tpu.dot_dimension_numbers<[1], [0], [0], [1], [0, 0, 1, 1], [], []>} : vector<16x16xf32>, vector<16x128xf32>, vector<16x128xf32> -> vector<16x128xf32>
    %cst_31 = arith.constant dense<0.000000e+00> : vector<16x128xf32>
    %42 = tpu.matmul %41, %38, %cst_31 {dimension_numbers = #tpu.dot_dimension_numbers<[1], [0], [0], [1], [0, 0, 1, 1], [], []>} : vector<16x128xf32>, vector<128x128xf32>, vector<16x128xf32> -> vector<16x128xf32>
    %cst_32 = arith.constant dense<0.000000e+00> : vector<16x128xf32>
    %43 = tpu.matmul %37, %40, %cst_32 {dimension_numbers = #tpu.dot_dimension_numbers<[1], [0], [0], [1], [0, 0, 1, 1], [], []>} : vector<16x128xf32>, vector<128x128xf32>, vector<16x128xf32> -> vector<16x128xf32>
    %44 = arith.addf %42, %43 : vector<16x128xf32>
    %45 = vector.broadcast %39 : vector<1x128xf32> to vector<16x128xf32>
    %46 = arith.addf %44, %45 : vector<16x128xf32>
    %cst_33 = arith.constant 0.000000e+00 : f32
    %47 = vector.broadcast %cst_33 : f32 to vector<16x128xf32>
    %48 = arith.maximumf %46, %47 : vector<16x128xf32>
    %cst_34 = arith.constant dense<0.000000e+00> : vector<128xf32>
    %49 = vector.multi_reduction <add>, %48, %cst_34 [0] : vector<16x128xf32> to vector<128xf32>
    %50 = vector.shape_cast %49 : vector<128xf32> to vector<1x128xf32>
    %cst_35 = arith.constant 6.250000e-02 : f32
    %51 = vector.broadcast %cst_35 : f32 to vector<1x128xf32>
    %52 = arith.mulf %50, %51 : vector<1x128xf32>
    %53 = arith.mulf %48, %48 : vector<16x128xf32>
    %cst_36 = arith.constant dense<0.000000e+00> : vector<128xf32>
    %54 = vector.multi_reduction <add>, %53, %cst_36 [0] : vector<16x128xf32> to vector<128xf32>
    %55 = vector.shape_cast %54 : vector<128xf32> to vector<1x128xf32>
    %cst_37 = arith.constant 6.250000e-02 : f32
    %56 = vector.broadcast %cst_37 : f32 to vector<1x128xf32>
    %57 = arith.mulf %55, %56 : vector<1x128xf32>
    %58 = arith.mulf %52, %52 : vector<1x128xf32>
    %59 = arith.subf %57, %58 : vector<1x128xf32>
    %c0_38 = arith.constant 0 : index
    %c0_39 = arith.constant 0 : index
    %60 = vector.load %arg14[%c0_38, %c0_39] : memref<1x128xf32, #tpu.memory_space<vmem>>, vector<1x128xf32>
    %cst_40 = arith.constant 9.99999974E-6 : f32
    %61 = vector.broadcast %cst_40 : f32 to vector<1x128xf32>
    %62 = arith.addf %59, %61 : vector<1x128xf32>
    %63 = math.rsqrt %62 : vector<1x128xf32>
    %64 = arith.mulf %60, %63 : vector<1x128xf32>
    %c0_41 = arith.constant 0 : index
    %c0_42 = arith.constant 0 : index
    %65 = vector.load %arg15[%c0_41, %c0_42] : memref<1x128xf32, #tpu.memory_space<vmem>>, vector<1x128xf32>
    %66 = arith.mulf %52, %64 : vector<1x128xf32>
    %67 = arith.subf %65, %66 : vector<1x128xf32>
    %68 = vector.broadcast %64 : vector<1x128xf32> to vector<16x128xf32>
    %69 = arith.mulf %48, %68 : vector<16x128xf32>
    %70 = vector.broadcast %67 : vector<1x128xf32> to vector<16x128xf32>
    %71 = arith.addf %69, %70 : vector<16x128xf32>
    %c0_43 = arith.constant 0 : index
    %c0_44 = arith.constant 0 : index
    %72 = vector.load %arg11[%c0_43, %c0_44] : memref<128x128xf32, #tpu.memory_space<vmem>>, vector<128x128xf32>
    %c0_45 = arith.constant 0 : index
    %c0_46 = arith.constant 0 : index
    %73 = vector.load %arg12[%c0_45, %c0_46] : memref<1x128xf32, #tpu.memory_space<vmem>>, vector<1x128xf32>
    %c0_47 = arith.constant 0 : index
    %c0_48 = arith.constant 0 : index
    %74 = vector.load %arg13[%c0_47, %c0_48] : memref<128x128xf32, #tpu.memory_space<vmem>>, vector<128x128xf32>
    %cst_49 = arith.constant dense<0.000000e+00> : vector<16x128xf32>
    %75 = tpu.matmul %0, %71, %cst_49 {dimension_numbers = #tpu.dot_dimension_numbers<[1], [0], [0], [1], [0, 0, 1, 1], [], []>} : vector<16x16xf32>, vector<16x128xf32>, vector<16x128xf32> -> vector<16x128xf32>
    %cst_50 = arith.constant dense<0.000000e+00> : vector<16x128xf32>
    %76 = tpu.matmul %75, %72, %cst_50 {dimension_numbers = #tpu.dot_dimension_numbers<[1], [0], [0], [1], [0, 0, 1, 1], [], []>} : vector<16x128xf32>, vector<128x128xf32>, vector<16x128xf32> -> vector<16x128xf32>
    %cst_51 = arith.constant dense<0.000000e+00> : vector<16x128xf32>
    %77 = tpu.matmul %71, %74, %cst_51 {dimension_numbers = #tpu.dot_dimension_numbers<[1], [0], [0], [1], [0, 0, 1, 1], [], []>} : vector<16x128xf32>, vector<128x128xf32>, vector<16x128xf32> -> vector<16x128xf32>
    %78 = arith.addf %76, %77 : vector<16x128xf32>
    %79 = vector.broadcast %73 : vector<1x128xf32> to vector<16x128xf32>
    %80 = arith.addf %78, %79 : vector<16x128xf32>
    %cst_52 = arith.constant 0.000000e+00 : f32
    %81 = vector.broadcast %cst_52 : f32 to vector<16x128xf32>
    %82 = arith.maximumf %80, %81 : vector<16x128xf32>
    %c0_53 = arith.constant 0 : index
    %c0_54 = arith.constant 0 : index
    %83 = vector.load %arg4[%c0_53, %c0_54] : memref<8x16xf32, #tpu.memory_space<vmem>>, vector<8x16xf32>
    %cst_55 = arith.constant dense<0.000000e+00> : vector<8x128xf32>
    %84 = tpu.matmul %83, %82, %cst_55 {dimension_numbers = #tpu.dot_dimension_numbers<[1], [0], [0], [1], [0, 0, 1, 1], [], []>} : vector<8x16xf32>, vector<16x128xf32>, vector<8x128xf32> -> vector<8x128xf32>
    %c0_56 = arith.constant 0 : index
    %c0_57 = arith.constant 0 : index
    %85 = vector.load %arg16[%c0_56, %c0_57] : memref<128x128xf32, #tpu.memory_space<vmem>>, vector<128x128xf32>
    %cst_58 = arith.constant dense<0.000000e+00> : vector<8x128xf32>
    %86 = tpu.matmul %84, %85, %cst_58 {dimension_numbers = #tpu.dot_dimension_numbers<[1], [0], [0], [1], [0, 0, 1, 1], [], []>} : vector<8x128xf32>, vector<128x128xf32>, vector<8x128xf32> -> vector<8x128xf32>
    %c0_59 = arith.constant 0 : index
    %c0_60 = arith.constant 0 : index
    %87 = vector.load %arg17[%c0_59, %c0_60] : memref<1x128xf32, #tpu.memory_space<vmem>>, vector<1x128xf32>
    %88 = vector.broadcast %87 : vector<1x128xf32> to vector<8x128xf32>
    %89 = arith.addf %86, %88 : vector<8x128xf32>
    %cst_61 = arith.constant 0.000000e+00 : f32
    %90 = vector.broadcast %cst_61 : f32 to vector<8x128xf32>
    %91 = arith.maximumf %89, %90 : vector<8x128xf32>
    %c0_62 = arith.constant 0 : index
    %c0_63 = arith.constant 0 : index
    %92 = vector.load %arg18[%c0_62, %c0_63] : memref<1x128xf32, #tpu.memory_space<vmem>>, vector<1x128xf32>
    %93 = vector.broadcast %92 : vector<1x128xf32> to vector<8x128xf32>
    %94 = arith.mulf %91, %93 : vector<8x128xf32>
    %cst_64 = arith.constant dense<0.000000e+00> : vector<8xf32>
    %95 = vector.multi_reduction <add>, %94, %cst_64 [1] : vector<8x128xf32> to vector<8xf32>
    %96 = vector.shape_cast %95 : vector<8xf32> to vector<8x1xf32>
    %97 = vector.shape_cast %96 : vector<8x1xf32> to vector<8x1xf32>
    %98 = vector.broadcast %97 : vector<8x1xf32> to vector<8x128xf32>
    %c0_65 = arith.constant 0 : index
    %c0_66 = arith.constant 0 : index
    %99 = vector.load %arg19[%c0_65, %c0_66] : memref<1x128xf32, #tpu.memory_space<vmem>>, vector<1x128xf32>
    %100 = vector.broadcast %99 : vector<1x128xf32> to vector<8x128xf32>
    %101 = arith.addf %98, %100 : vector<8x128xf32>
    %c0_67 = arith.constant 0 : index
    %c0_68 = arith.constant 0 : index
    %102 = vector.load %arg20[%c0_67, %c0_68] : memref<8x128xf32, #tpu.memory_space<vmem>>, vector<8x128xf32>
    tpu.vector_store %arg20[%c0_67, %c0_68], %101 {strides = array<i32>} : memref<8x128xf32, #tpu.memory_space<vmem>>, vector<8x128xf32>,
    return
  }
  func.func @transform_0(%arg0: i32) -> (i32, i32) {
    %c0_i32 = arith.constant 0 : i32
    %c0_i32_0 = arith.constant 0 : i32
    %c0_i32_1 = arith.constant 0 : i32
    return %c0_i32, %c0_i32_0 : i32, i32
  }
  func.func @transform_1(%arg0: i32) -> (i32, i32) {
    %c0_i32 = arith.constant 0 : i32
    %c0_i32_0 = arith.constant 0 : i32
    %c0_i32_1 = arith.constant 0 : i32
    return %c0_i32, %c0_i32_0 : i32, i32
  }
  func.func @transform_2(%arg0: i32) -> (i32, i32) {
    %c0_i32 = arith.constant 0 : i32
    %c0_i32_0 = arith.constant 0 : i32
    %c0_i32_1 = arith.constant 0 : i32
    return %c0_i32, %c0_i32_0 : i32, i32
  }
  func.func @transform_3(%arg0: i32) -> (i32, i32) {
    %c0_i32 = arith.constant 0 : i32
    %c0_i32_0 = arith.constant 0 : i32
    %c0_i32_1 = arith.constant 0 : i32
    return %c0_i32, %c0_i32_0 : i32, i32
  }
  func.func @transform_4(%arg0: i32) -> (i32, i32) {
    %c0_i32 = arith.constant 0 : i32
    %c0_i32_0 = arith.constant 0 : i32
    %c0_i32_1 = arith.constant 0 : i32
    return %c0_i32, %c0_i32_0 : i32, i32
  }
  func.func @transform_5(%arg0: i32) -> (i32, i32) {
    %c0_i32 = arith.constant 0 : i32
    %c0_i32_0 = arith.constant 0 : i32
    %c0_i32_1 = arith.constant 0 : i32
    return %c0_i32, %c0_i32_0 : i32, i32
  }
  func.func @transform_6(%arg0: i32) -> (i32, i32) {
    %c0_i32 = arith.constant 0 : i32
    %c0_i32_0 = arith.constant 0 : i32
    %c0_i32_1 = arith.constant 0 : i32
    return %c0_i32, %c0_i32_0 : i32, i32
  }
  func.func @transform_7(%arg0: i32) -> (i32, i32) {
    %c0_i32 = arith.constant 0 : i32
    %c0_i32_0 = arith.constant 0 : i32
    %c0_i32_1 = arith.constant 0 : i32
    return %c0_i32, %c0_i32_0 : i32, i32
  }
  func.func @transform_8(%arg0: i32) -> (i32, i32) {
    %c0_i32 = arith.constant 0 : i32
    %c0_i32_0 = arith.constant 0 : i32
    %c0_i32_1 = arith.constant 0 : i32
    return %c0_i32, %c0_i32_0 : i32, i32
  }
  func.func @transform_9(%arg0: i32) -> (i32, i32) {
    %c0_i32 = arith.constant 0 : i32
    %c0_i32_0 = arith.constant 0 : i32
    %c0_i32_1 = arith.constant 0 : i32
    return %c0_i32, %c0_i32_0 : i32, i32
  }
  func.func @transform_10(%arg0: i32) -> (i32, i32) {
    %c0_i32 = arith.constant 0 : i32
    %c0_i32_0 = arith.constant 0 : i32
    %c0_i32_1 = arith.constant 0 : i32
    return %c0_i32, %c0_i32_0 : i32, i32
  }
  func.func @transform_11(%arg0: i32) -> (i32, i32) {
    %c0_i32 = arith.constant 0 : i32
    %c0_i32_0 = arith.constant 0 : i32
    %c0_i32_1 = arith.constant 0 : i32
    return %c0_i32, %c0_i32_0 : i32, i32
  }
  func.func @transform_12(%arg0: i32) -> (i32, i32) {
    %c0_i32 = arith.constant 0 : i32
    %c0_i32_0 = arith.constant 0 : i32
    %c0_i32_1 = arith.constant 0 : i32
    return %c0_i32, %c0_i32_0 : i32, i32
  }
  func.func @transform_13(%arg0: i32) -> (i32, i32) {
    %c0_i32 = arith.constant 0 : i32
    %c0_i32_0 = arith.constant 0 : i32
    %c0_i32_1 = arith.constant 0 : i32
    return %c0_i32, %c0_i32_0 : i32, i32
  }
  func.func @transform_14(%arg0: i32) -> (i32, i32) {
    %c0_i32 = arith.constant 0 : i32
    %c0_i32_0 = arith.constant 0 : i32
    %c0_i32_1 = arith.constant 0 : i32
    return %c0_i32, %c0_i32_0 : i32, i32
  }
  func.func @transform_15(%arg0: i32) -> (i32, i32) {
    %c0_i32 = arith.constant 0 : i32
    %c0_i32_0 = arith.constant 0 : i32
    %c0_i32_1 = arith.constant 0 : i32
    return %c0_i32, %c0_i32_0 : i32, i32
  }
  func.func @transform_16(%arg0: i32) -> (i32, i32) {
    %c0_i32 = arith.constant 0 : i32
    %c0_i32_0 = arith.constant 0 : i32
    %c0_i32_1 = arith.constant 0 : i32
    return %c0_i32, %c0_i32_0 : i32, i32
  }
  func.func @transform_17(%arg0: i32) -> (i32, i32) {
    %c0_i32 = arith.constant 0 : i32
    %c0_i32_0 = arith.constant 0 : i32
    %c0_i32_1 = arith.constant 0 : i32
    return %c0_i32, %c0_i32_0 : i32, i32
  }
  func.func @transform_18(%arg0: i32) -> (i32, i32) {
    %c0_i32 = arith.constant 0 : i32
    %c0_i32_0 = arith.constant 0 : i32
    %c0_i32_1 = arith.constant 0 : i32
    return %c0_i32, %c0_i32_0 : i32, i32
  }
  func.func @transform_19(%arg0: i32) -> (i32, i32) {
    %c0_i32 = arith.constant 0 : i32
    %c0_i32_0 = arith.constant 0 : i32
    %c0_i32_1 = arith.constant 0 : i32
    return %c0_i32, %c0_i32_0 : i32, i32
  }
}

</mosaic_0001>

<llo_original>
// kernel: gcn_net_forward.1
$region0: #{gcn_net_forward.1}
  #allocation0 [shape = 'u32[]', space=smem, size = 0x4, offset = 0x4, fixed_abs, tag = 'smem constant byte address 0x4 - core index']
  #allocation1 [shape = 'u32[144,128]{1,0:T(1,128)}', space=vmem, size = 0x12000, scoped, tag = 'internal scratch']
  %s0 = inlined_call_operand.vmem [shape: f32[16,128], index: 0, kind: input, shape index: {}]
  %s1 = inlined_call_operand.vmem [shape: f32[128,128], index: 1, kind: input, shape index: {}]
  %s2 = inlined_call_operand.vmem [shape: f32[16,16], index: 2, kind: input, shape index: {}]
  %s3 = inlined_call_operand.vmem [shape: f32[8,16], index: 3, kind: input, shape index: {}]
  %s4 = inlined_call_operand.vmem [shape: f32[128,128], index: 4, kind: input, shape index: {}]
  %s5 = inlined_call_operand.vmem [shape: f32[1,128], index: 5, kind: input, shape index: {}]
  %s6 = inlined_call_operand.vmem [shape: f32[128,128], index: 6, kind: input, shape index: {}]
  %s7 = inlined_call_operand.vmem [shape: f32[128,128], index: 7, kind: input, shape index: {}]
  %s8 = inlined_call_operand.vmem [shape: f32[1,128], index: 8, kind: input, shape index: {}]
  %s9 = inlined_call_operand.vmem [shape: f32[128,128], index: 9, kind: input, shape index: {}]
  %s10 = inlined_call_operand.vmem [shape: f32[128,128], index: 10, kind: input, shape index: {}]
  %s11 = inlined_call_operand.vmem [shape: f32[1,128], index: 11, kind: input, shape index: {}]
  %s12 = inlined_call_operand.vmem [shape: f32[128,128], index: 12, kind: input, shape index: {}]
  %s13 = inlined_call_operand.vmem [shape: f32[1,128], index: 13, kind: input, shape index: {}]
  %s14 = inlined_call_operand.vmem [shape: f32[1,128], index: 14, kind: input, shape index: {}]
  %s15 = inlined_call_operand.vmem [shape: f32[128,128], index: 15, kind: input, shape index: {}]
  %s16 = inlined_call_operand.vmem [shape: f32[1,128], index: 16, kind: input, shape index: {}]
  %s17 = inlined_call_operand.vmem [shape: f32[1,128], index: 17, kind: input, shape index: {}]
  %s18 = inlined_call_operand.vmem [shape: f32[1,128], index: 18, kind: input, shape index: {}]
  %s19 = inlined_call_operand.vmem [shape: f32[8,128], index: 19, kind: output, shape index: {}]
  %s20 = sld [smem:[#allocation0]]
  $region86: #{gcn_net_forward.1} parent=0
    _
  %s22 = ssub.s32 1, %s20
  %s23 = scalar_select 0, %s22, %s20
  // Predicated region
  $region2: #{gcn_net_forward.1} parent=0 // pred_check
    _
  $region3: #{gcn_net_forward.1} parent=0 // pred_check_branch
    %25 = sbr.rel (0) target = $region5
  $region4: #{gcn_net_forward.1} parent=0 // pred_region
    _
  $region5: #{gcn_net_forward.1} parent=0 // pred_fallthru
    _
  // Predicated region
  $region6: #{gcn_net_forward.1} parent=0 // pred_check
    _
  $region7: #{gcn_net_forward.1} parent=0 // pred_check_branch
    %27 = sbr.rel (0) target = $region9
  $region8: #{gcn_net_forward.1} parent=0 // pred_region
    _
  $region9: #{gcn_net_forward.1} parent=0 // pred_fallthru
    _
  // Predicated region
  $region10: #{gcn_net_forward.1} parent=0 // pred_check
    _
  $region11: #{gcn_net_forward.1} parent=0 // pred_check_branch
    %29 = sbr.rel (0) target = $region13
  $region12: #{gcn_net_forward.1} parent=0 // pred_region
    _
  $region13: #{gcn_net_forward.1} parent=0 // pred_fallthru
    _
  // Predicated region
  $region14: #{gcn_net_forward.1} parent=0 // pred_check
    _
  $region15: #{gcn_net_forward.1} parent=0 // pred_check_branch
    %31 = sbr.rel (0) target = $region17
  $region16: #{gcn_net_forward.1} parent=0 // pred_region
    _
  $region17: #{gcn_net_forward.1} parent=0 // pred_fallthru
    _
  // Predicated region
  $region18: #{gcn_net_forward.1} parent=0 // pred_check
    _
  $region19: #{gcn_net_forward.1} parent=0 // pred_check_branch
    %33 = sbr.rel (0) target = $region21
  $region20: #{gcn_net_forward.1} parent=0 // pred_region
    _
  $region21: #{gcn_net_forward.1} parent=0 // pred_fallthru
    _
  // Predicated region
  $region22: #{gcn_net_forward.1} parent=0 // pred_check
    _
  $region23: #{gcn_net_forward.1} parent=0 // pred_check_branch
    %35 = sbr.rel (0) target = $region25
  $region24: #{gcn_net_forward.1} parent=0 // pred_region
    _
  $region25: #{gcn_net_forward.1} parent=0 // pred_fallthru
    _
  // Predicated region
  $region26: #{gcn_net_forward.1} parent=0 // pred_check
    _
  $region27: #{gcn_net_forward.1} parent=0 // pred_check_branch
    %37 = sbr.rel (0) target = $region29
  $region28: #{gcn_net_forward.1} parent=0 // pred_region
    _
  $region29: #{gcn_net_forward.1} parent=0 // pred_fallthru
    _
  // Predicated region
  $region30: #{gcn_net_forward.1} parent=0 // pred_check
    _
  $region31: #{gcn_net_forward.1} parent=0 // pred_check_branch
    %39 = sbr.rel (0) target = $region33
  $region32: #{gcn_net_forward.1} parent=0 // pred_region
    _
  $region33: #{gcn_net_forward.1} parent=0 // pred_fallthru
    _
  // Predicated region
  $region34: #{gcn_net_forward.1} parent=0 // pred_check
    _
  $region35: #{gcn_net_forward.1} parent=0 // pred_check_branch
    %41 = sbr.rel (0) target = $region37
  $region36: #{gcn_net_forward.1} parent=0 // pred_region
    _
  $region37: #{gcn_net_forward.1} parent=0 // pred_fallthru
    _
  // Predicated region
  $region38: #{gcn_net_forward.1} parent=0 // pred_check
    _
  $region39: #{gcn_net_forward.1} parent=0 // pred_check_branch
    %43 = sbr.rel (0) target = $region41
  $region40: #{gcn_net_forward.1} parent=0 // pred_region
    _
  $region41: #{gcn_net_forward.1} parent=0 // pred_fallthru
    _
  // Predicated region
  $region42: #{gcn_net_forward.1} parent=0 // pred_check
    _
  $region43: #{gcn_net_forward.1} parent=0 // pred_check_branch
    %45 = sbr.rel (0) target = $region45
  $region44: #{gcn_net_forward.1} parent=0 // pred_region
    _
  $region45: #{gcn_net_forward.1} parent=0 // pred_fallthru
    _
  // Predicated region
  $region46: #{gcn_net_forward.1} parent=0 // pred_check
    _
  $region47: #{gcn_net_forward.1} parent=0 // pred_check_branch
    %47 = sbr.rel (0) target = $region49
  $region48: #{gcn_net_forward.1} parent=0 // pred_region
    _
  $region49: #{gcn_net_forward.1} parent=0 // pred_fallthru
    _
  // Predicated region
  $region50: #{gcn_net_forward.1} parent=0 // pred_check
    _
  $region51: #{gcn_net_forward.1} parent=0 // pred_check_branch
    %49 = sbr.rel (0) target = $region53
  $region52: #{gcn_net_forward.1} parent=0 // pred_region
    _
  $region53: #{gcn_net_forward.1} parent=0 // pred_fallthru
    _
  // Predicated region
  $region54: #{gcn_net_forward.1} parent=0 // pred_check
    _
  $region55: #{gcn_net_forward.1} parent=0 // pred_check_branch
    %51 = sbr.rel (0) target = $region57
  $region56: #{gcn_net_forward.1} parent=0 // pred_region
    _
  $region57: #{gcn_net_forward.1} parent=0 // pred_fallthru
    _
  // Predicated region
  $region58: #{gcn_net_forward.1} parent=0 // pred_check
    _
  $region59: #{gcn_net_forward.1} parent=0 // pred_check_branch
    %53 = sbr.rel (0) target = $region61
  $region60: #{gcn_net_forward.1} parent=0 // pred_region
    _
  $region61: #{gcn_net_forward.1} parent=0 // pred_fallthru
    _
  // Predicated region
  $region62: #{gcn_net_forward.1} parent=0 // pred_check
    _
  $region63: #{gcn_net_forward.1} parent=0 // pred_check_branch
    %55 = sbr.rel (0) target = $region65
  $region64: #{gcn_net_forward.1} parent=0 // pred_region
    _
  $region65: #{gcn_net_forward.1} parent=0 // pred_fallthru
    _
  // Predicated region
  $region66: #{gcn_net_forward.1} parent=0 // pred_check
    _
  $region67: #{gcn_net_forward.1} parent=0 // pred_check_branch
    %57 = sbr.rel (0) target = $region69
  $region68: #{gcn_net_forward.1} parent=0 // pred_region
    _
  $region69: #{gcn_net_forward.1} parent=0 // pred_fallthru
    _
  // Predicated region
  $region70: #{gcn_net_forward.1} parent=0 // pred_check
    _
  $region71: #{gcn_net_forward.1} parent=0 // pred_check_branch
    %59 = sbr.rel (0) target = $region73
  $region72: #{gcn_net_forward.1} parent=0 // pred_region
    _
  $region73: #{gcn_net_forward.1} parent=0 // pred_fallthru
    _
  // Predicated region
  $region74: #{gcn_net_forward.1} parent=0 // pred_check
    _
  $region75: #{gcn_net_forward.1} parent=0 // pred_check_branch
    %61 = sbr.rel (0) target = $region77
  $region76: #{gcn_net_forward.1} parent=0 // pred_region
    _
  $region77: #{gcn_net_forward.1} parent=0 // pred_fallthru
    _
  %v62 = vld [vmem:[%s2] sm:$0xff]
  %v63 = vld [vmem:[%s2 + $0x8] sm:$0xff]
  %v64 = vld [vmem:[%s0] sm:$0xff]
  %v65 = vld [vmem:[%s0 + $0x8] sm:$0xff]
  %v66 = vld [vmem:[%s1] sm:$0xff]
  %v67 = vld [vmem:[%s1 + $0x8] sm:$0xff]
  %v68 = vld [vmem:[%s1 + $0x10] sm:$0xff]
  %v69 = vld [vmem:[%s1 + $0x18] sm:$0xff]
  %v70 = vld [vmem:[%s1 + $0x20] sm:$0xff]
  %v71 = vld [vmem:[%s1 + $0x28] sm:$0xff]
  %v72 = vld [vmem:[%s1 + $0x30] sm:$0xff]
  %v73 = vld [vmem:[%s1 + $0x38] sm:$0xff]
  %v74 = vld [vmem:[%s1 + $0x40] sm:$0xff]
  %v75 = vld [vmem:[%s1 + $0x48] sm:$0xff]
  %v76 = vld [vmem:[%s1 + $0x50] sm:$0xff]
  %v77 = vld [vmem:[%s1 + $0x58] sm:$0xff]
  %v78 = vld [vmem:[%s1 + $0x60] sm:$0xff]
  %v79 = vld [vmem:[%s1 + $0x68] sm:$0xff]
  %v80 = vld [vmem:[%s1 + $0x70] sm:$0xff]
  %v81 = vld [vmem:[%s1 + $0x78] sm:$0xff]
  %82 = vmatprep.subr.mxu0 0.0
  %83 = vmatpush1.msra.mxu0 %v66
  %84 = vmatprep.subr.mxu0 0.0
  %85 = vmatpush1.msra.mxu0 %v67
  %86 = vmatprep.subr.mxu0 0.0
  %87 = vmatpush1.msra.mxu0 %v68
  %88 = vmatprep.subr.mxu0 0.0
  %89 = vmatpush1.msra.mxu0 %v69
  %90 = vmatprep.subr.mxu0 0.0
  %91 = vmatpush1.msra.mxu0 %v70
  %92 = vmatprep.subr.mxu0 0.0
  %93 = vmatpush1.msra.mxu0 %v71
  %94 = vmatprep.subr.mxu0 0.0
  %95 = vmatpush1.msra.mxu0 %v72
  %96 = vmatprep.subr.mxu0 0.0
  %97 = vmatpush1.msra.mxu0 %v73
  %98 = vmatprep.subr.mxu0 0.0
  %99 = vmatpush1.msra.mxu0 %v74
  %100 = vmatprep.subr.mxu0 0.0
  %101 = vmatpush1.msra.mxu0 %v75
  %102 = vmatprep.subr.mxu0 0.0
  %103 = vmatpush1.msra.mxu0 %v76
  %104 = vmatprep.subr.mxu0 0.0
  %105 = vmatpush1.msra.mxu0 %v77
  %106 = vmatprep.subr.mxu0 0.0
  %107 = vmatpush1.msra.mxu0 %v78
  %108 = vmatprep.subr.mxu0 0.0
  %109 = vmatpush1.msra.mxu0 %v79
  %110 = vmatprep.subr.mxu0 0.0
  %111 = vmatpush1.msra.mxu0 %v80
  %112 = vmatprep.subr.mxu0 0.0
  %113 = vmatpush1.msra.mxu0 %v81
  %114 = vmatprep.subr.mxu0 0.0
  %115 = vmatpush1.msra.mxu0 0.0
  %116 = vmatprep.subr.mxu0 0.0
  %117 = vmatpush1.msra.mxu0 0.0
  %118 = vmatprep.subr.mxu0 0.0
  %119 = vmatpush1.msra.mxu0 0.0
  %120 = vmatprep.subr.mxu0 0.0
  %121 = vmatpush1.msra.mxu0 0.0
  %122 = vmatprep.subr.mxu0 0.0
  %123 = vmatpush1.msra.mxu0 0.0
  %124 = vmatprep.subr.mxu0 0.0
  %125 = vmatpush1.msra.mxu0 0.0
  %126 = vmatprep.subr.mxu0 0.0
  %127 = vmatpush1.msra.mxu0 0.0
  %128 = vmatprep.subr.mxu0 0.0
  %129 = vmatpush1.msra.mxu0 0.0
  %130 = vmatprep.subr.mxu0 0.0
  %131 = vmatpush1.msra.mxu0 0.0
  %132 = vmatprep.subr.mxu0 0.0
  %133 = vmatpush1.msra.mxu0 0.0
  %134 = vmatprep.subr.mxu0 0.0
  %135 = vmatpush1.msra.mxu0 0.0
  %136 = vmatprep.subr.mxu0 0.0
  %137 = vmatpush1.msra.mxu0 0.0
  %138 = vmatprep.subr.mxu0 0.0
  %139 = vmatpush1.msra.mxu0 0.0
  %140 = vmatprep.subr.mxu0 0.0
  %141 = vmatpush1.msra.mxu0 0.0
  %142 = vmatprep.subr.mxu0 0.0
  %143 = vmatpush1.msra.mxu0 0.0
  %144 = vmatprep.subr.mxu0 0.0
  %145 = vmatpush1.msra.mxu0 0.0
  %146 = vmatprep.mubr.f32.mxu0 0.0
  %147 = vmatmul.mubr.f32.gmra.mrb[0].mxu0 %v64
  %v148 = vpop.f32.mrb[0].mxu0
  %v149 = vadd.f32 0.0, %v148
  %v150 = vpop.f32.mrb[0].mxu0
  %151 = vmatprep.mubr.f32.mxu0 0.0
  %152 = vmatmul.mubr.f32.gmra.mrb[0].mxu0 %v65
  %v153 = vpop.f32.mrb[0].mxu0
  %v154 = vadd.f32 0.0, %v153
  %v155 = vpop.f32.mrb[0].mxu0
  %156 = vdwg.mxu0
  %v157 = vld [vmem:[%s4] sm:$0xff]
  %v158 = vld [vmem:[%s4 + $0x8] sm:$0xff]
  %v159 = vld [vmem:[%s4 + $0x10] sm:$0xff]
  %v160 = vld [vmem:[%s4 + $0x18] sm:$0xff]
  %v161 = vld [vmem:[%s4 + $0x20] sm:$0xff]
  %v162 = vld [vmem:[%s4 + $0x28] sm:$0xff]
  %v163 = vld [vmem:[%s4 + $0x30] sm:$0xff]
  %v164 = vld [vmem:[%s4 + $0x38] sm:$0xff]
  %v165 = vld [vmem:[%s4 + $0x40] sm:$0xff]
  %v166 = vld [vmem:[%s4 + $0x48] sm:$0xff]
  %v167 = vld [vmem:[%s4 + $0x50] sm:$0xff]
  %v168 = vld [vmem:[%s4 + $0x58] sm:$0xff]
  %v169 = vld [vmem:[%s4 + $0x60] sm:$0xff]
  %v170 = vld [vmem:[%s4 + $0x68] sm:$0xff]
  %v171 = vld [vmem:[%s4 + $0x70] sm:$0xff]
  %v172 = vld [vmem:[%s4 + $0x78] sm:$0xff]
  %v173 = vld [vmem:[%s5] sm:$0x1]
  %v174 = vld [vmem:[%s6] sm:$0xff]
  %v175 = vld [vmem:[%s6 + $0x8] sm:$0xff]
  %v176 = vld [vmem:[%s6 + $0x10] sm:$0xff]
  %v177 = vld [vmem:[%s6 + $0x18] sm:$0xff]
  %v178 = vld [vmem:[%s6 + $0x20] sm:$0xff]
  %v179 = vld [vmem:[%s6 + $0x28] sm:$0xff]
  %v180 = vld [vmem:[%s6 + $0x30] sm:$0xff]
  %v181 = vld [vmem:[%s6 + $0x38] sm:$0xff]
  %v182 = vld [vmem:[%s6 + $0x40] sm:$0xff]
  %v183 = vld [vmem:[%s6 + $0x48] sm:$0xff]
  %v184 = vld [vmem:[%s6 + $0x50] sm:$0xff]
  %v185 = vld [vmem:[%s6 + $0x58] sm:$0xff]
  %v186 = vld [vmem:[%s6 + $0x60] sm:$0xff]
  %v187 = vld [vmem:[%s6 + $0x68] sm:$0xff]
  %v188 = vld [vmem:[%s6 + $0x70] sm:$0xff]
  %v189 = vld [vmem:[%s6 + $0x78] sm:$0xff]
  %vm190 = vcmask 130048
  %v192 = vsel %vm190, %v62, 0
  %v195 = vsel %vm190, %v63, 0
  %197 = vmatprep.subr.mxu0 0.0
  %198 = vmatpush1.msra.mxu0 %v149
  %199 = vmatprep.subr.mxu0 0.0
  %200 = vmatpush1.msra.mxu0 %v154
  %201 = vmatprep.subr.mxu0 0.0
  %202 = vmatpush1.msra.mxu0 0.0
  %203 = vmatprep.subr.mxu0 0.0
  %204 = vmatpush1.msra.mxu0 0.0
  %205 = vmatprep.subr.mxu0 0.0
  %206 = vmatpush1.msra.mxu0 0.0
  %207 = vmatprep.subr.mxu0 0.0
  %208 = vmatpush1.msra.mxu0 0.0
  %209 = vmatprep.subr.mxu0 0.0
  %210 = vmatpush1.msra.mxu0 0.0
  %211 = vmatprep.subr.mxu0 0.0
  %212 = vmatpush1.msra.mxu0 0.0
  %213 = vmatprep.subr.mxu0 0.0
  %214 = vmatpush1.msra.mxu0 0.0
  %215 = vmatprep.subr.mxu0 0.0
  %216 = vmatpush1.msra.mxu0 0.0
  %217 = vmatprep.subr.mxu0 0.0
  %218 = vmatpush1.msra.mxu0 0.0
  %219 = vmatprep.subr.mxu0 0.0
  %220 = vmatpush1.msra.mxu0 0.0
  %221 = vmatprep.subr.mxu0 0.0
  %222 = vmatpush1.msra.mxu0 0.0
  %223 = vmatprep.subr.mxu0 0.0
  %224 = vmatpush1.msra.mxu0 0.0
  %225 = vmatprep.subr.mxu0 0.0
  %226 = vmatpush1.msra.mxu0 0.0
  %227 = vmatprep.subr.mxu0 0.0
  %228 = vmatpush1.msra.mxu0 0.0
  %229 = vmatprep.subr.mxu0 0.0
  %230 = vmatpush1.msra.mxu0 0.0
  %231 = vmatprep.subr.mxu0 0.0
  %232 = vmatpush1.msra.mxu0 0.0
  %233 = vmatprep.subr.mxu0 0.0
  %234 = vmatpush1.msra.mxu0 0.0
  %235 = vmatprep.subr.mxu0 0.0
  %236 = vmatpush1.msra.mxu0 0.0
  %237 = vmatprep.subr.mxu0 0.0
  %238 = vmatpush1.msra.mxu0 0.0
  %239 = vmatprep.subr.mxu0 0.0
  %240 = vmatpush1.msra.mxu0 0.0
  %241 = vmatprep.subr.mxu0 0.0
  %242 = vmatpush1.msra.mxu0 0.0
  %243 = vmatprep.subr.mxu0 0.0
  %244 = vmatpush1.msra.mxu0 0.0
  %245 = vmatprep.subr.mxu0 0.0
  %246 = vmatpush1.msra.mxu0 0.0
  %247 = vmatprep.subr.mxu0 0.0
  %248 = vmatpush1.msra.mxu0 0.0
  %249 = vmatprep.subr.mxu0 0.0
  %250 = vmatpush1.msra.mxu0 0.0
  %251 = vmatprep.subr.mxu0 0.0
  %252 = vmatpush1.msra.mxu0 0.0
  %253 = vmatprep.subr.mxu0 0.0
  %254 = vmatpush1.msra.mxu0 0.0
  %255 = vmatprep.subr.mxu0 0.0
  %256 = vmatpush1.msra.mxu0 0.0
  %257 = vmatprep.subr.mxu0 0.0
  %258 = vmatpush1.msra.mxu0 0.0
  %259 = vmatprep.subr.mxu0 0.0
  %260 = vmatpush1.msra.mxu0 0.0
  %261 = vmatprep.mubr.f32.mxu0 0.0
  %262 = vmatmul.mubr.f32.gmra.mrb[0].mxu0 %v192
  %v263 = vpop.f32.mrb[0].mxu0
  %v264 = vadd.f32 0.0, %v263
  %v265 = vpop.f32.mrb[0].mxu0
  %266 = vmatprep.mubr.f32.mxu0 0.0
  %267 = vmatmul.mubr.f32.gmra.mrb[0].mxu0 %v195
  %v268 = vpop.f32.mrb[0].mxu0
  %v269 = vadd.f32 0.0, %v268
  %v270 = vpop.f32.mrb[0].mxu0
  %271 = vdwg.mxu0
  %272 = vmatprep.subr.mxu0 0.0
  %273 = vmatpush1.msra.mxu0 %v174
  %274 = vmatprep.subr.mxu0 0.0
  %275 = vmatpush1.msra.mxu0 %v175
  %276 = vmatprep.subr.mxu0 0.0
  %277 = vmatpush1.msra.mxu0 %v176
  %278 = vmatprep.subr.mxu0 0.0
  %279 = vmatpush1.msra.mxu0 %v177
  %280 = vmatprep.subr.mxu0 0.0
  %281 = vmatpush1.msra.mxu0 %v178
  %282 = vmatprep.subr.mxu0 0.0
  %283 = vmatpush1.msra.mxu0 %v179
  %284 = vmatprep.subr.mxu0 0.0
  %285 = vmatpush1.msra.mxu0 %v180
  %286 = vmatprep.subr.mxu0 0.0
  %287 = vmatpush1.msra.mxu0 %v181
  %288 = vmatprep.subr.mxu0 0.0
  %289 = vmatpush1.msra.mxu0 %v182
  %290 = vmatprep.subr.mxu0 0.0
  %291 = vmatpush1.msra.mxu0 %v183
  %292 = vmatprep.subr.mxu0 0.0
  %293 = vmatpush1.msra.mxu0 %v184
  %294 = vmatprep.subr.mxu0 0.0
  %295 = vmatpush1.msra.mxu0 %v185
  %296 = vmatprep.subr.mxu0 0.0
  %297 = vmatpush1.msra.mxu0 %v186
  %298 = vmatprep.subr.mxu0 0.0
  %299 = vmatpush1.msra.mxu0 %v187
  %300 = vmatprep.subr.mxu0 0.0
  %301 = vmatpush1.msra.mxu0 %v188
  %302 = vmatprep.subr.mxu0 0.0
  %303 = vmatpush1.msra.mxu0 %v189
  %304 = vmatprep.subr.mxu0 0.0
  %305 = vmatpush1.msra.mxu0 0.0
  %306 = vmatprep.subr.mxu0 0.0
  %307 = vmatpush1.msra.mxu0 0.0
  %308 = vmatprep.subr.mxu0 0.0
  %309 = vmatpush1.msra.mxu0 0.0
  %310 = vmatprep.subr.mxu0 0.0
  %311 = vmatpush1.msra.mxu0 0.0
  %312 = vmatprep.subr.mxu0 0.0
  %313 = vmatpush1.msra.mxu0 0.0
  %314 = vmatprep.subr.mxu0 0.0
  %315 = vmatpush1.msra.mxu0 0.0
  %316 = vmatprep.subr.mxu0 0.0
  %317 = vmatpush1.msra.mxu0 0.0
  %318 = vmatprep.subr.mxu0 0.0
  %319 = vmatpush1.msra.mxu0 0.0
  %320 = vmatprep.subr.mxu0 0.0
  %321 = vmatpush1.msra.mxu0 0.0
  %322 = vmatprep.subr.mxu0 0.0
  %323 = vmatpush1.msra.mxu0 0.0
  %324 = vmatprep.subr.mxu0 0.0
  %325 = vmatpush1.msra.mxu0 0.0
  %326 = vmatprep.subr.mxu0 0.0
  %327 = vmatpush1.msra.mxu0 0.0
  %328 = vmatprep.subr.mxu0 0.0
  %329 = vmatpush1.msra.mxu0 0.0
  %330 = vmatprep.subr.mxu0 0.0
  %331 = vmatpush1.msra.mxu0 0.0
  %332 = vmatprep.subr.mxu0 0.0
  %333 = vmatpush1.msra.mxu0 0.0
  %334 = vmatprep.subr.mxu0 0.0
  %335 = vmatpush1.msra.mxu0 0.0
  %336 = vmatprep.mubr.f32.mxu0 0.0
  %337 = vmatmul.mubr.f32.gmra.mrb[0].mxu0 %v149
  %v338 = vpop.f32.mrb[0].mxu0
  %v339 = vadd.f32 0.0, %v338
  %v340 = vpop.f32.mrb[0].mxu0
  %341 = vmatprep.mubr.f32.mxu0 0.0
  %342 = vmatmul.mubr.f32.gmra.mrb[0].mxu0 %v154
  %v343 = vpop.f32.mrb[0].mxu0
  %v344 = vadd.f32 0.0, %v343
  %v345 = vpop.f32.mrb[0].mxu0
  %346 = vdwg.mxu0
  %347 = vmatprep.subr.mxu0 0.0
  %348 = vmatpush1.msra.mxu0 %v157
  %349 = vmatprep.subr.mxu0 0.0
  %350 = vmatpush1.msra.mxu0 %v158
  %351 = vmatprep.subr.mxu0 0.0
  %352 = vmatpush1.msra.mxu0 %v159
  %353 = vmatprep.subr.mxu0 0.0
  %354 = vmatpush1.msra.mxu0 %v160
  %355 = vmatprep.subr.mxu0 0.0
  %356 = vmatpush1.msra.mxu0 %v161
  %357 = vmatprep.subr.mxu0 0.0
  %358 = vmatpush1.msra.mxu0 %v162
  %359 = vmatprep.subr.mxu0 0.0
  %360 = vmatpush1.msra.mxu0 %v163
  %361 = vmatprep.subr.mxu0 0.0
  %362 = vmatpush1.msra.mxu0 %v164
  %363 = vmatprep.subr.mxu0 0.0
  %364 = vmatpush1.msra.mxu0 %v165
  %365 = vmatprep.subr.mxu0 0.0
  %366 = vmatpush1.msra.mxu0 %v166
  %367 = vmatprep.subr.mxu0 0.0
  %368 = vmatpush1.msra.mxu0 %v167
  %369 = vmatprep.subr.mxu0 0.0
  %370 = vmatpush1.msra.mxu0 %v168
  %371 = vmatprep.subr.mxu0 0.0
  %372 = vmatpush1.msra.mxu0 %v169
  %373 = vmatprep.subr.mxu0 0.0
  %374 = vmatpush1.msra.mxu0 %v170
  %375 = vmatprep.subr.mxu0 0.0
  %376 = vmatpush1.msra.mxu0 %v171
  %377 = vmatprep.subr.mxu0 0.0
  %378 = vmatpush1.msra.mxu0 %v172
  %379 = vmatprep.subr.mxu0 0.0
  %380 = vmatpush1.msra.mxu0 0.0
  %381 = vmatprep.subr.mxu0 0.0
  %382 = vmatpush1.msra.mxu0 0.0
  %383 = vmatprep.subr.mxu0 0.0
  %384 = vmatpush1.msra.mxu0 0.0
  %385 = vmatprep.subr.mxu0 0.0
  %386 = vmatpush1.msra.mxu0 0.0
  %387 = vmatprep.subr.mxu0 0.0
  %388 = vmatpush1.msra.mxu0 0.0
  %389 = vmatprep.subr.mxu0 0.0
  %390 = vmatpush1.msra.mxu0 0.0
  %391 = vmatprep.subr.mxu0 0.0
  %392 = vmatpush1.msra.mxu0 0.0
  %393 = vmatprep.subr.mxu0 0.0
  %394 = vmatpush1.msra.mxu0 0.0
  %395 = vmatprep.subr.mxu0 0.0
  %396 = vmatpush1.msra.mxu0 0.0
  %397 = vmatprep.subr.mxu0 0.0
  %398 = vmatpush1.msra.mxu0 0.0
  %399 = vmatprep.subr.mxu0 0.0
  %400 = vmatpush1.msra.mxu0 0.0
  %401 = vmatprep.subr.mxu0 0.0
  %402 = vmatpush1.msra.mxu0 0.0
  %403 = vmatprep.subr.mxu0 0.0
  %404 = vmatpush1.msra.mxu0 0.0
  %405 = vmatprep.subr.mxu0 0.0
  %406 = vmatpush1.msra.mxu0 0.0
  %407 = vmatprep.subr.mxu0 0.0
  %408 = vmatpush1.msra.mxu0 0.0
  %409 = vmatprep.subr.mxu0 0.0
  %410 = vmatpush1.msra.mxu0 0.0
  %411 = vmatprep.mubr.f32.mxu0 0.0
  %412 = vmatmul.mubr.f32.gmra.mrb[0].mxu0 %v264
  %v413 = vpop.f32.mrb[0].mxu0
  %v414 = vadd.f32 %v339, %v413
  %v415 = vpop.f32.mrb[0].mxu0
  %416 = vmatprep.mubr.f32.mxu0 0.0
  %417 = vmatmul.mubr.f32.gmra.mrb[0].mxu0 %v269
  %v418 = vpop.f32.mrb[0].mxu0
  %v419 = vadd.f32 %v344, %v418
  %v420 = vpop.f32.mrb[0].mxu0
  %421 = vdwg.mxu0
  %v423 = vlaneseq
  %v424 = vshrl.u32 %v423, 7
  %v425 = vsub.s32 0, %v424
  %v426 = vrot.slane %v173, %v425
  %v428 = vadd.f32 %v414, %v426
  %v429 = vadd.f32 %v419, %v426
  %v430 = vmax.f32 %v428, 0.0
  %v431 = vmax.f32 %v429, 0.0
  %v432 = vadd.f32 %v430, %v431
  %v433 = vrot.slane %v432, 4
  %v434 = vadd.f32 %v432, %v433
  %v435 = vrot.slane %v434, 2
  %v436 = vadd.f32 %v434, %v435
  %v437 = vrot.slane %v436, 1
  %v438 = vadd.f32 %v436, %v437
  %v439 = vmul.f32 %v438, 0.0625
  %v440 = vmul.f32 %v430, %v430
  %v441 = vmul.f32 %v431, %v431
  %v442 = vadd.f32 %v440, %v441
  %v443 = vrot.slane %v442, 4
  %v444 = vadd.f32 %v442, %v443
  %v445 = vrot.slane %v444, 2
  %v446 = vadd.f32 %v444, %v445
  %v447 = vrot.slane %v446, 1
  %v448 = vadd.f32 %v446, %v447
  %v449 = vmul.f32 %v448, 0.0625
  %v450 = vmul.f32 %v439, %v439
  %v451 = vsub.f32 %v449, %v450
  %v452 = vld [vmem:[%s13] sm:$0x1]
  %v453 = vadd.f32 %v451, 1e-05
  %v454 = vrsqrt.pop %v453
  %v455 = vmul.f32 %v452, %v454
  %v456 = vld [vmem:[%s14] sm:$0x1]
  %v457 = vmul.f32 %v439, %v455
  %v458 = vsub.f32 %v456, %v457
  %v460 = vlaneseq
  %v461 = vshrl.u32 %v460, 7
  %v462 = vsub.s32 0, %v461
  %v463 = vrot.slane %v455, %v462
  %v465 = vmul.f32 %v430, %v463
  %v466 = vmul.f32 %v431, %v463
  %v468 = vlaneseq
  %v469 = vshrl.u32 %v468, 7
  %v470 = vsub.s32 0, %v469
  %v471 = vrot.slane %v458, %v470
  %v473 = vadd.f32 %v465, %v471
  %v474 = vadd.f32 %v466, %v471
  %v475 = vld [vmem:[%s7] sm:$0xff]
  %v476 = vld [vmem:[%s7 + $0x8] sm:$0xff]
  %v477 = vld [vmem:[%s7 + $0x10] sm:$0xff]
  %v478 = vld [vmem:[%s7 + $0x18] sm:$0xff]
  %v479 = vld [vmem:[%s7 + $0x20] sm:$0xff]
  %v480 = vld [vmem:[%s7 + $0x28] sm:$0xff]
  %v481 = vld [vmem:[%s7 + $0x30] sm:$0xff]
  %v482 = vld [vmem:[%s7 + $0x38] sm:$0xff]
  %v483 = vld [vmem:[%s7 + $0x40] sm:$0xff]
  %v484 = vld [vmem:[%s7 + $0x48] sm:$0xff]
  %v485 = vld [vmem:[%s7 + $0x50] sm:$0xff]
  %v486 = vld [vmem:[%s7 + $0x58] sm:$0xff]
  %v487 = vld [vmem:[%s7 + $0x60] sm:$0xff]
  %v488 = vld [vmem:[%s7 + $0x68] sm:$0xff]
  %v489 = vld [vmem:[%s7 + $0x70] sm:$0xff]
  %v490 = vld [vmem:[%s7 + $0x78] sm:$0xff]
  %v491 = vld [vmem:[%s8] sm:$0x1]
  %v492 = vld [vmem:[%s9] sm:$0xff]
  %v493 = vld [vmem:[%s9 + $0x8] sm:$0xff]
  %v494 = vld [vmem:[%s9 + $0x10] sm:$0xff]
  %v495 = vld [vmem:[%s9 + $0x18] sm:$0xff]
  %v496 = vld [vmem:[%s9 + $0x20] sm:$0xff]
  %v497 = vld [vmem:[%s9 + $0x28] sm:$0xff]
  %v498 = vld [vmem:[%s9 + $0x30] sm:$0xff]
  %v499 = vld [vmem:[%s9 + $0x38] sm:$0xff]
  %v500 = vld [vmem:[%s9 + $0x40] sm:$0xff]
  %v501 = vld [vmem:[%s9 + $0x48] sm:$0xff]
  %v502 = vld [vmem:[%s9 + $0x50] sm:$0xff]
  %v503 = vld [vmem:[%s9 + $0x58] sm:$0xff]
  %v504 = vld [vmem:[%s9 + $0x60] sm:$0xff]
  %v505 = vld [vmem:[%s9 + $0x68] sm:$0xff]
  %v506 = vld [vmem:[%s9 + $0x70] sm:$0xff]
  %v507 = vld [vmem:[%s9 + $0x78] sm:$0xff]
  %508 = vmatprep.subr.mxu0 0.0
  %509 = vmatpush1.msra.mxu0 %v473
  %510 = vmatprep.subr.mxu0 0.0
  %511 = vmatpush1.msra.mxu0 %v474
  %512 = vmatprep.subr.mxu0 0.0
  %513 = vmatpush1.msra.mxu0 0.0
  %514 = vmatprep.subr.mxu0 0.0
  %515 = vmatpush1.msra.mxu0 0.0
  %516 = vmatprep.subr.mxu0 0.0
  %517 = vmatpush1.msra.mxu0 0.0
  %518 = vmatprep.subr.mxu0 0.0
  %519 = vmatpush1.msra.mxu0 0.0
  %520 = vmatprep.subr.mxu0 0.0
  %521 = vmatpush1.msra.mxu0 0.0
  %522 = vmatprep.subr.mxu0 0.0
  %523 = vmatpush1.msra.mxu0 0.0
  %524 = vmatprep.subr.mxu0 0.0
  %525 = vmatpush1.msra.mxu0 0.0
  %526 = vmatprep.subr.mxu0 0.0
  %527 = vmatpush1.msra.mxu0 0.0
  %528 = vmatprep.subr.mxu0 0.0
  %529 = vmatpush1.msra.mxu0 0.0
  %530 = vmatprep.subr.mxu0 0.0
  %531 = vmatpush1.msra.mxu0 0.0
  %532 = vmatprep.subr.mxu0 0.0
  %533 = vmatpush1.msra.mxu0 0.0
  %534 = vmatprep.subr.mxu0 0.0
  %535 = vmatpush1.msra.mxu0 0.0
  %536 = vmatprep.subr.mxu0 0.0
  %537 = vmatpush1.msra.mxu0 0.0
  %538 = vmatprep.subr.mxu0 0.0
  %539 = vmatpush1.msra.mxu0 0.0
  %540 = vmatprep.subr.mxu0 0.0
  %541 = vmatpush1.msra.mxu0 0.0
  %542 = vmatprep.subr.mxu0 0.0
  %543 = vmatpush1.msra.mxu0 0.0
  %544 = vmatprep.subr.mxu0 0.0
  %545 = vmatpush1.msra.mxu0 0.0
  %546 = vmatprep.subr.mxu0 0.0
  %547 = vmatpush1.msra.mxu0 0.0
  %548 = vmatprep.subr.mxu0 0.0
  %549 = vmatpush1.msra.mxu0 0.0
  %550 = vmatprep.subr.mxu0 0.0
  %551 = vmatpush1.msra.mxu0 0.0
  %552 = vmatprep.subr.mxu0 0.0
  %553 = vmatpush1.msra.mxu0 0.0
  %554 = vmatprep.subr.mxu0 0.0
  %555 = vmatpush1.msra.mxu0 0.0
  %556 = vmatprep.subr.mxu0 0.0
  %557 = vmatpush1.msra.mxu0 0.0
  %558 = vmatprep.subr.mxu0 0.0
  %559 = vmatpush1.msra.mxu0 0.0
  %560 = vmatprep.subr.mxu0 0.0
  %561 = vmatpush1.msra.mxu0 0.0
  %562 = vmatprep.subr.mxu0 0.0
  %563 = vmatpush1.msra.mxu0 0.0
  %564 = vmatprep.subr.mxu0 0.0
  %565 = vmatpush1.msra.mxu0 0.0
  %566 = vmatprep.subr.mxu0 0.0
  %567 = vmatpush1.msra.mxu0 0.0
  %568 = vmatprep.subr.mxu0 0.0
  %569 = vmatpush1.msra.mxu0 0.0
  %570 = vmatprep.subr.mxu0 0.0
  %571 = vmatpush1.msra.mxu0 0.0
  %572 = vmatprep.mubr.f32.mxu0 0.0
  %573 = vmatmul.mubr.f32.gmra.mrb[0].mxu0 %v192
  %v574 = vpop.f32.mrb[0].mxu0
  %v575 = vadd.f32 0.0, %v574
  %v576 = vpop.f32.mrb[0].mxu0
  %577 = vmatprep.mubr.f32.mxu0 0.0
  %578 = vmatmul.mubr.f32.gmra.mrb[0].mxu0 %v195
  %v579 = vpop.f32.mrb[0].mxu0
  %v580 = vadd.f32 0.0, %v579
  %v581 = vpop.f32.mrb[0].mxu0
  %582 = vdwg.mxu0
  %583 = vmatprep.subr.mxu0 0.0
  %584 = vmatpush1.msra.mxu0 %v492
  %585 = vmatprep.subr.mxu0 0.0
  %586 = vmatpush1.msra.mxu0 %v493
  %587 = vmatprep.subr.mxu0 0.0
  %588 = vmatpush1.msra.mxu0 %v494
  %589 = vmatprep.subr.mxu0 0.0
  %590 = vmatpush1.msra.mxu0 %v495
  %591 = vmatprep.subr.mxu0 0.0
  %592 = vmatpush1.msra.mxu0 %v496
  %593 = vmatprep.subr.mxu0 0.0
  %594 = vmatpush1.msra.mxu0 %v497
  %595 = vmatprep.subr.mxu0 0.0
  %596 = vmatpush1.msra.mxu0 %v498
  %597 = vmatprep.subr.mxu0 0.0
  %598 = vmatpush1.msra.mxu0 %v499
  %599 = vmatprep.subr.mxu0 0.0
  %600 = vmatpush1.msra.mxu0 %v500
  %601 = vmatprep.subr.mxu0 0.0
  %602 = vmatpush1.msra.mxu0 %v501
  %603 = vmatprep.subr.mxu0 0.0
  %604 = vmatpush1.msra.mxu0 %v502
  %605 = vmatprep.subr.mxu0 0.0
  %606 = vmatpush1.msra.mxu0 %v503
  %607 = vmatprep.subr.mxu0 0.0
  %608 = vmatpush1.msra.mxu0 %v504
  %609 = vmatprep.subr.mxu0 0.0
  %610 = vmatpush1.msra.mxu0 %v505
  %611 = vmatprep.subr.mxu0 0.0
  %612 = vmatpush1.msra.mxu0 %v506
  %613 = vmatprep.subr.mxu0 0.0
  %614 = vmatpush1.msra.mxu0 %v507
  %615 = vmatprep.subr.mxu0 0.0
  %616 = vmatpush1.msra.mxu0 0.0
  %617 = vmatprep.subr.mxu0 0.0
  %618 = vmatpush1.msra.mxu0 0.0
  %619 = vmatprep.subr.mxu0 0.0
  %620 = vmatpush1.msra.mxu0 0.0
  %621 = vmatprep.subr.mxu0 0.0
  %622 = vmatpush1.msra.mxu0 0.0
  %623 = vmatprep.subr.mxu0 0.0
  %624 = vmatpush1.msra.mxu0 0.0
  %625 = vmatprep.subr.mxu0 0.0
  %626 = vmatpush1.msra.mxu0 0.0
  %627 = vmatprep.subr.mxu0 0.0
  %628 = vmatpush1.msra.mxu0 0.0
  %629 = vmatprep.subr.mxu0 0.0
  %630 = vmatpush1.msra.mxu0 0.0
  %631 = vmatprep.subr.mxu0 0.0
  %632 = vmatpush1.msra.mxu0 0.0
  %633 = vmatprep.subr.mxu0 0.0
  %634 = vmatpush1.msra.mxu0 0.0
  %635 = vmatprep.subr.mxu0 0.0
  %636 = vmatpush1.msra.mxu0 0.0
  %637 = vmatprep.subr.mxu0 0.0
  %638 = vmatpush1.msra.mxu0 0.0
  %639 = vmatprep.subr.mxu0 0.0
  %640 = vmatpush1.msra.mxu0 0.0
  %641 = vmatprep.subr.mxu0 0.0
  %642 = vmatpush1.msra.mxu0 0.0
  %643 = vmatprep.subr.mxu0 0.0
  %644 = vmatpush1.msra.mxu0 0.0
  %645 = vmatprep.subr.mxu0 0.0
  %646 = vmatpush1.msra.mxu0 0.0
  %647 = vmatprep.mubr.f32.mxu0 0.0
  %648 = vmatmul.mubr.f32.gmra.mrb[0].mxu0 %v473
  %v649 = vpop.f32.mrb[0].mxu0
  %v650 = vadd.f32 0.0, %v649
  %v651 = vpop.f32.mrb[0].mxu0
  %652 = vmatprep.mubr.f32.mxu0 0.0
  %653 = vmatmul.mubr.f32.gmra.mrb[0].mxu0 %v474
  %v654 = vpop.f32.mrb[0].mxu0
  %v655 = vadd.f32 0.0, %v654
  %v656 = vpop.f32.mrb[0].mxu0
  %657 = vdwg.mxu0
  %658 = vmatprep.subr.mxu0 0.0
  %659 = vmatpush1.msra.mxu0 %v475
  %660 = vmatprep.subr.mxu0 0.0
  %661 = vmatpush1.msra.mxu0 %v476
  %662 = vmatprep.subr.mxu0 0.0
  %663 = vmatpush1.msra.mxu0 %v477
  %664 = vmatprep.subr.mxu0 0.0
  %665 = vmatpush1.msra.mxu0 %v478
  %666 = vmatprep.subr.mxu0 0.0
  %667 = vmatpush1.msra.mxu0 %v479
  %668 = vmatprep.subr.mxu0 0.0
  %669 = vmatpush1.msra.mxu0 %v480
  %670 = vmatprep.subr.mxu0 0.0
  %671 = vmatpush1.msra.mxu0 %v481
  %672 = vmatprep.subr.mxu0 0.0
  %673 = vmatpush1.msra.mxu0 %v482
  %674 = vmatprep.subr.mxu0 0.0
  %675 = vmatpush1.msra.mxu0 %v483
  %676 = vmatprep.subr.mxu0 0.0
  %677 = vmatpush1.msra.mxu0 %v484
  %678 = vmatprep.subr.mxu0 0.0
  %679 = vmatpush1.msra.mxu0 %v485
  %680 = vmatprep.subr.mxu0 0.0
  %681 = vmatpush1.msra.mxu0 %v486
  %682 = vmatprep.subr.mxu0 0.0
  %683 = vmatpush1.msra.mxu0 %v487
  %684 = vmatprep.subr.mxu0 0.0
  %685 = vmatpush1.msra.mxu0 %v488
  %686 = vmatprep.subr.mxu0 0.0
  %687 = vmatpush1.msra.mxu0 %v489
  %688 = vmatprep.subr.mxu0 0.0
  %689 = vmatpush1.msra.mxu0 %v490
  %690 = vmatprep.subr.mxu0 0.0
  %691 = vmatpush1.msra.mxu0 0.0
  %692 = vmatprep.subr.mxu0 0.0
  %693 = vmatpush1.msra.mxu0 0.0
  %694 = vmatprep.subr.mxu0 0.0
  %695 = vmatpush1.msra.mxu0 0.0
  %696 = vmatprep.subr.mxu0 0.0
  %697 = vmatpush1.msra.mxu0 0.0
  %698 = vmatprep.subr.mxu0 0.0
  %699 = vmatpush1.msra.mxu0 0.0
  %700 = vmatprep.subr.mxu0 0.0
  %701 = vmatpush1.msra.mxu0 0.0
  %702 = vmatprep.subr.mxu0 0.0
  %703 = vmatpush1.msra.mxu0 0.0
  %704 = vmatprep.subr.mxu0 0.0
  %705 = vmatpush1.msra.mxu0 0.0
  %706 = vmatprep.subr.mxu0 0.0
  %707 = vmatpush1.msra.mxu0 0.0
  %708 = vmatprep.subr.mxu0 0.0
  %709 = vmatpush1.msra.mxu0 0.0
  %710 = vmatprep.subr.mxu0 0.0
  %711 = vmatpush1.msra.mxu0 0.0
  %712 = vmatprep.subr.mxu0 0.0
  %713 = vmatpush1.msra.mxu0 0.0
  %714 = vmatprep.subr.mxu0 0.0
  %715 = vmatpush1.msra.mxu0 0.0
  %716 = vmatprep.subr.mxu0 0.0
  %717 = vmatpush1.msra.mxu0 0.0
  %718 = vmatprep.subr.mxu0 0.0
  %719 = vmatpush1.msra.mxu0 0.0
  %720 = vmatprep.subr.mxu0 0.0
  %721 = vmatpush1.msra.mxu0 0.0
  %722 = vmatprep.mubr.f32.mxu0 0.0
  %723 = vmatmul.mubr.f32.gmra.mrb[0].mxu0 %v575
  %v724 = vpop.f32.mrb[0].mxu0
  %v725 = vadd.f32 %v650, %v724
  %v726 = vpop.f32.mrb[0].mxu0
  %727 = vmatprep.mubr.f32.mxu0 0.0
  %728 = vmatmul.mubr.f32.gmra.mrb[0].mxu0 %v580
  %v729 = vpop.f32.mrb[0].mxu0
  %v730 = vadd.f32 %v655, %v729
  %v731 = vpop.f32.mrb[0].mxu0
  %732 = vdwg.mxu0
  %v734 = vlaneseq
  %v735 = vshrl.u32 %v734, 7
  %v736 = vsub.s32 0, %v735
  %v737 = vrot.slane %v491, %v736
  %v739 = vadd.f32 %v725, %v737
  %v740 = vadd.f32 %v730, %v737
  %v741 = vmax.f32 %v739, 0.0
  %v742 = vmax.f32 %v740, 0.0
  %v743 = vadd.f32 %v741, %v742
  %v744 = vrot.slane %v743, 4
  %v745 = vadd.f32 %v743, %v744
  %v746 = vrot.slane %v745, 2
  %v747 = vadd.f32 %v745, %v746
  %v748 = vrot.slane %v747, 1
  %v749 = vadd.f32 %v747, %v748
  %v750 = vmul.f32 %v749, 0.0625
  %v751 = vmul.f32 %v741, %v741
  %v752 = vmul.f32 %v742, %v742
  %v753 = vadd.f32 %v751, %v752
  %v754 = vrot.slane %v753, 4
  %v755 = vadd.f32 %v753, %v754
  %v756 = vrot.slane %v755, 2
  %v757 = vadd.f32 %v755, %v756
  %v758 = vrot.slane %v757, 1
  %v759 = vadd.f32 %v757, %v758
  %v760 = vmul.f32 %v759, 0.0625
  %v761 = vmul.f32 %v750, %v750
  %v762 = vsub.f32 %v760, %v761
  %v763 = vadd.f32 %v762, 1e-05
  %v764 = vrsqrt.pop %v763
  %v765 = vmul.f32 %v452, %v764
  %v766 = vmul.f32 %v750, %v765
  %v767 = vsub.f32 %v456, %v766
  %v769 = vlaneseq
  %v770 = vshrl.u32 %v769, 7
  %v771 = vsub.s32 0, %v770
  %v772 = vrot.slane %v765, %v771
  %v774 = vmul.f32 %v741, %v772
  %v775 = vmul.f32 %v742, %v772
  %v777 = vlaneseq
  %v778 = vshrl.u32 %v777, 7
  %v779 = vsub.s32 0, %v778
  %v780 = vrot.slane %v767, %v779
  %v782 = vadd.f32 %v774, %v780
  %v783 = vadd.f32 %v775, %v780
  %v784 = vld [vmem:[%s10] sm:$0xff]
  %v785 = vld [vmem:[%s10 + $0x8] sm:$0xff]
  %v786 = vld [vmem:[%s10 + $0x10] sm:$0xff]
  %v787 = vld [vmem:[%s10 + $0x18] sm:$0xff]
  %v788 = vld [vmem:[%s10 + $0x20] sm:$0xff]
  %v789 = vld [vmem:[%s10 + $0x28] sm:$0xff]
  %v790 = vld [vmem:[%s10 + $0x30] sm:$0xff]
  %v791 = vld [vmem:[%s10 + $0x38] sm:$0xff]
  %v792 = vld [vmem:[%s10 + $0x40] sm:$0xff]
  %v793 = vld [vmem:[%s10 + $0x48] sm:$0xff]
  %v794 = vld [vmem:[%s10 + $0x50] sm:$0xff]
  %v795 = vld [vmem:[%s10 + $0x58] sm:$0xff]
  %v796 = vld [vmem:[%s10 + $0x60] sm:$0xff]
  %v797 = vld [vmem:[%s10 + $0x68] sm:$0xff]
  %v798 = vld [vmem:[%s10 + $0x70] sm:$0xff]
  %v799 = vld [vmem:[%s10 + $0x78] sm:$0xff]
  %v800 = vld [vmem:[%s11] sm:$0x1]
  %v801 = vld [vmem:[%s12] sm:$0xff]
  %v802 = vld [vmem:[%s12 + $0x8] sm:$0xff]
  %v803 = vld [vmem:[%s12 + $0x10] sm:$0xff]
  %v804 = vld [vmem:[%s12 + $0x18] sm:$0xff]
  %v805 = vld [vmem:[%s12 + $0x20] sm:$0xff]
  %v806 = vld [vmem:[%s12 + $0x28] sm:$0xff]
  %v807 = vld [vmem:[%s12 + $0x30] sm:$0xff]
  %v808 = vld [vmem:[%s12 + $0x38] sm:$0xff]
  %v809 = vld [vmem:[%s12 + $0x40] sm:$0xff]
  %v810 = vld [vmem:[%s12 + $0x48] sm:$0xff]
  %v811 = vld [vmem:[%s12 + $0x50] sm:$0xff]
  %v812 = vld [vmem:[%s12 + $0x58] sm:$0xff]
  %v813 = vld [vmem:[%s12 + $0x60] sm:$0xff]
  %v814 = vld [vmem:[%s12 + $0x68] sm:$0xff]
  %v815 = vld [vmem:[%s12 + $0x70] sm:$0xff]
  %v816 = vld [vmem:[%s12 + $0x78] sm:$0xff]
  %817 = vmatprep.subr.mxu0 0.0
  %818 = vmatpush1.msra.mxu0 %v782
  %819 = vmatprep.subr.mxu0 0.0
  %820 = vmatpush1.msra.mxu0 %v783
  %821 = vmatprep.subr.mxu0 0.0
  %822 = vmatpush1.msra.mxu0 0.0
  %823 = vmatprep.subr.mxu0 0.0
  %824 = vmatpush1.msra.mxu0 0.0
  %825 = vmatprep.subr.mxu0 0.0
  %826 = vmatpush1.msra.mxu0 0.0
  %827 = vmatprep.subr.mxu0 0.0
  %828 = vmatpush1.msra.mxu0 0.0
  %829 = vmatprep.subr.mxu0 0.0
  %830 = vmatpush1.msra.mxu0 0.0
  %831 = vmatprep.subr.mxu0 0.0
  %832 = vmatpush1.msra.mxu0 0.0
  %833 = vmatprep.subr.mxu0 0.0
  %834 = vmatpush1.msra.mxu0 0.0
  %835 = vmatprep.subr.mxu0 0.0
  %836 = vmatpush1.msra.mxu0 0.0
  %837 = vmatprep.subr.mxu0 0.0
  %838 = vmatpush1.msra.mxu0 0.0
  %839 = vmatprep.subr.mxu0 0.0
  %840 = vmatpush1.msra.mxu0 0.0
  %841 = vmatprep.subr.mxu0 0.0
  %842 = vmatpush1.msra.mxu0 0.0
  %843 = vmatprep.subr.mxu0 0.0
  %844 = vmatpush1.msra.mxu0 0.0
  %845 = vmatprep.subr.mxu0 0.0
  %846 = vmatpush1.msra.mxu0 0.0
  %847 = vmatprep.subr.mxu0 0.0
  %848 = vmatpush1.msra.mxu0 0.0
  %849 = vmatprep.subr.mxu0 0.0
  %850 = vmatpush1.msra.mxu0 0.0
  %851 = vmatprep.subr.mxu0 0.0
  %852 = vmatpush1.msra.mxu0 0.0
  %853 = vmatprep.subr.mxu0 0.0
  %854 = vmatpush1.msra.mxu0 0.0
  %855 = vmatprep.subr.mxu0 0.0
  %856 = vmatpush1.msra.mxu0 0.0
  %857 = vmatprep.subr.mxu0 0.0
  %858 = vmatpush1.msra.mxu0 0.0
  %859 = vmatprep.subr.mxu0 0.0
  %860 = vmatpush1.msra.mxu0 0.0
  %861 = vmatprep.subr.mxu0 0.0
  %862 = vmatpush1.msra.mxu0 0.0
  %863 = vmatprep.subr.mxu0 0.0
  %864 = vmatpush1.msra.mxu0 0.0
  %865 = vmatprep.subr.mxu0 0.0
  %866 = vmatpush1.msra.mxu0 0.0
  %867 = vmatprep.subr.mxu0 0.0
  %868 = vmatpush1.msra.mxu0 0.0
  %869 = vmatprep.subr.mxu0 0.0
  %870 = vmatpush1.msra.mxu0 0.0
  %871 = vmatprep.subr.mxu0 0.0
  %872 = vmatpush1.msra.mxu0 0.0
  %873 = vmatprep.subr.mxu0 0.0
  %874 = vmatpush1.msra.mxu0 0.0
  %875 = vmatprep.subr.mxu0 0.0
  %876 = vmatpush1.msra.mxu0 0.0
  %877 = vmatprep.subr.mxu0 0.0
  %878 = vmatpush1.msra.mxu0 0.0
  %879 = vmatprep.subr.mxu0 0.0
  %880 = vmatpush1.msra.mxu0 0.0
  %881 = vmatprep.mubr.f32.mxu0 0.0
  %882 = vmatmul.mubr.f32.gmra.mrb[0].mxu0 %v192
  %v883 = vpop.f32.mrb[0].mxu0
  %v884 = vadd.f32 0.0, %v883
  %v885 = vpop.f32.mrb[0].mxu0
  %886 = vmatprep.mubr.f32.mxu0 0.0
  %887 = vmatmul.mubr.f32.gmra.mrb[0].mxu0 %v195
  %v888 = vpop.f32.mrb[0].mxu0
  %v889 = vadd.f32 0.0, %v888
  %v890 = vpop.f32.mrb[0].mxu0
  %891 = vdwg.mxu0
  %892 = vmatprep.subr.mxu0 0.0
  %893 = vmatpush1.msra.mxu0 %v801
  %894 = vmatprep.subr.mxu0 0.0
  %895 = vmatpush1.msra.mxu0 %v802
  %896 = vmatprep.subr.mxu0 0.0
  %897 = vmatpush1.msra.mxu0 %v803
  %898 = vmatprep.subr.mxu0 0.0
  %899 = vmatpush1.msra.mxu0 %v804
  %900 = vmatprep.subr.mxu0 0.0
  %901 = vmatpush1.msra.mxu0 %v805
  %902 = vmatprep.subr.mxu0 0.0
  %903 = vmatpush1.msra.mxu0 %v806
  %904 = vmatprep.subr.mxu0 0.0
  %905 = vmatpush1.msra.mxu0 %v807
  %906 = vmatprep.subr.mxu0 0.0
  %907 = vmatpush1.msra.mxu0 %v808
  %908 = vmatprep.subr.mxu0 0.0
  %909 = vmatpush1.msra.mxu0 %v809
  %910 = vmatprep.subr.mxu0 0.0
  %911 = vmatpush1.msra.mxu0 %v810
  %912 = vmatprep.subr.mxu0 0.0
  %913 = vmatpush1.msra.mxu0 %v811
  %914 = vmatprep.subr.mxu0 0.0
  %915 = vmatpush1.msra.mxu0 %v812
  %916 = vmatprep.subr.mxu0 0.0
  %917 = vmatpush1.msra.mxu0 %v813
  %918 = vmatprep.subr.mxu0 0.0
  %919 = vmatpush1.msra.mxu0 %v814
  %920 = vmatprep.subr.mxu0 0.0
  %921 = vmatpush1.msra.mxu0 %v815
  %922 = vmatprep.subr.mxu0 0.0
  %923 = vmatpush1.msra.mxu0 %v816
  %924 = vmatprep.subr.mxu0 0.0
  %925 = vmatpush1.msra.mxu0 0.0
  %926 = vmatprep.subr.mxu0 0.0
  %927 = vmatpush1.msra.mxu0 0.0
  %928 = vmatprep.subr.mxu0 0.0
  %929 = vmatpush1.msra.mxu0 0.0
  %930 = vmatprep.subr.mxu0 0.0
  %931 = vmatpush1.msra.mxu0 0.0
  %932 = vmatprep.subr.mxu0 0.0
  %933 = vmatpush1.msra.mxu0 0.0
  %934 = vmatprep.subr.mxu0 0.0
  %935 = vmatpush1.msra.mxu0 0.0
  %936 = vmatprep.subr.mxu0 0.0
  %937 = vmatpush1.msra.mxu0 0.0
  %938 = vmatprep.subr.mxu0 0.0
  %939 = vmatpush1.msra.mxu0 0.0
  %940 = vmatprep.subr.mxu0 0.0
  %941 = vmatpush1.msra.mxu0 0.0
  %942 = vmatprep.subr.mxu0 0.0
  %943 = vmatpush1.msra.mxu0 0.0
  %944 = vmatprep.subr.mxu0 0.0
  %945 = vmatpush1.msra.mxu0 0.0
  %946 = vmatprep.subr.mxu0 0.0
  %947 = vmatpush1.msra.mxu0 0.0
  %948 = vmatprep.subr.mxu0 0.0
  %949 = vmatpush1.msra.mxu0 0.0
  %950 = vmatprep.subr.mxu0 0.0
  %951 = vmatpush1.msra.mxu0 0.0
  %952 = vmatprep.subr.mxu0 0.0
  %953 = vmatpush1.msra.mxu0 0.0
  %954 = vmatprep.subr.mxu0 0.0
  %955 = vmatpush1.msra.mxu0 0.0
  %956 = vmatprep.mubr.f32.mxu0 0.0
  %957 = vmatmul.mubr.f32.gmra.mrb[0].mxu0 %v782
  %v958 = vpop.f32.mrb[0].mxu0
  %v959 = vadd.f32 0.0, %v958
  %v960 = vpop.f32.mrb[0].mxu0
  %961 = vmatprep.mubr.f32.mxu0 0.0
  %962 = vmatmul.mubr.f32.gmra.mrb[0].mxu0 %v783
  %v963 = vpop.f32.mrb[0].mxu0
  %v964 = vadd.f32 0.0, %v963
  %v965 = vpop.f32.mrb[0].mxu0
  %966 = vdwg.mxu0
  %967 = vmatprep.subr.mxu0 0.0
  %968 = vmatpush1.msra.mxu0 %v784
  %969 = vmatprep.subr.mxu0 0.0
  %970 = vmatpush1.msra.mxu0 %v785
  %971 = vmatprep.subr.mxu0 0.0
  %972 = vmatpush1.msra.mxu0 %v786
  %973 = vmatprep.subr.mxu0 0.0
  %974 = vmatpush1.msra.mxu0 %v787
  %975 = vmatprep.subr.mxu0 0.0
  %976 = vmatpush1.msra.mxu0 %v788
  %977 = vmatprep.subr.mxu0 0.0
  %978 = vmatpush1.msra.mxu0 %v789
  %979 = vmatprep.subr.mxu0 0.0
  %980 = vmatpush1.msra.mxu0 %v790
  %981 = vmatprep.subr.mxu0 0.0
  %982 = vmatpush1.msra.mxu0 %v791
  %983 = vmatprep.subr.mxu0 0.0
  %984 = vmatpush1.msra.mxu0 %v792
  %985 = vmatprep.subr.mxu0 0.0
  %986 = vmatpush1.msra.mxu0 %v793
  %987 = vmatprep.subr.mxu0 0.0
  %988 = vmatpush1.msra.mxu0 %v794
  %989 = vmatprep.subr.mxu0 0.0
  %990 = vmatpush1.msra.mxu0 %v795
  %991 = vmatprep.subr.mxu0 0.0
  %992 = vmatpush1.msra.mxu0 %v796
  %993 = vmatprep.subr.mxu0 0.0
  %994 = vmatpush1.msra.mxu0 %v797
  %995 = vmatprep.subr.mxu0 0.0
  %996 = vmatpush1.msra.mxu0 %v798
  %997 = vmatprep.subr.mxu0 0.0
  %998 = vmatpush1.msra.mxu0 %v799
  %999 = vmatprep.subr.mxu0 0.0
  %1000 = vmatpush1.msra.mxu0 0.0
  %1001 = vmatprep.subr.mxu0 0.0
  %1002 = vmatpush1.msra.mxu0 0.0
  %1003 = vmatprep.subr.mxu0 0.0
  %1004 = vmatpush1.msra.mxu0 0.0
  %1005 = vmatprep.subr.mxu0 0.0
  %1006 = vmatpush1.msra.mxu0 0.0
  %1007 = vmatprep.subr.mxu0 0.0
  %1008 = vmatpush1.msra.mxu0 0.0
  %1009 = vmatprep.subr.mxu0 0.0
  %1010 = vmatpush1.msra.mxu0 0.0
  %1011 = vmatprep.subr.mxu0 0.0
  %1012 = vmatpush1.msra.mxu0 0.0
  %1013 = vmatprep.subr.mxu0 0.0
  %1014 = vmatpush1.msra.mxu0 0.0
  %1015 = vmatprep.subr.mxu0 0.0
  %1016 = vmatpush1.msra.mxu0 0.0
  %1017 = vmatprep.subr.mxu0 0.0
  %1018 = vmatpush1.msra.mxu0 0.0
  %1019 = vmatprep.subr.mxu0 0.0
  %1020 = vmatpush1.msra.mxu0 0.0
  %1021 = vmatprep.subr.mxu0 0.0
  %1022 = vmatpush1.msra.mxu0 0.0
  %1023 = vmatprep.subr.mxu0 0.0
  %1024 = vmatpush1.msra.mxu0 0.0
  %1025 = vmatprep.subr.mxu0 0.0
  %1026 = vmatpush1.msra.mxu0 0.0
  %1027 = vmatprep.subr.mxu0 0.0
  %1028 = vmatpush1.msra.mxu0 0.0
  %1029 = vmatprep.subr.mxu0 0.0
  %1030 = vmatpush1.msra.mxu0 0.0
  %1031 = vmatprep.mubr.f32.mxu0 0.0
  %1032 = vmatmul.mubr.f32.gmra.mrb[0].mxu0 %v884
  %v1033 = vpop.f32.mrb[0].mxu0
  %v1034 = vadd.f32 %v959, %v1033
  %v1035 = vpop.f32.mrb[0].mxu0
  %1036 = vmatprep.mubr.f32.mxu0 0.0
  %1037 = vmatmul.mubr.f32.gmra.mrb[0].mxu0 %v889
  %v1038 = vpop.f32.mrb[0].mxu0
  %v1039 = vadd.f32 %v964, %v1038
  %v1040 = vpop.f32.mrb[0].mxu0
  %1041 = vdwg.mxu0
  %v1043 = vlaneseq
  %v1044 = vshrl.u32 %v1043, 7
  %v1045 = vsub.s32 0, %v1044
  %v1046 = vrot.slane %v800, %v1045
  %v1048 = vadd.f32 %v1034, %v1046
  %v1049 = vadd.f32 %v1039, %v1046
  %v1050 = vmax.f32 %v1048, 0.0
  %v1051 = vmax.f32 %v1049, 0.0
  %v1052 = vld [vmem:[%s3] sm:$0xff]
  %v1054 = vsel %vm190, %v1052, 0
  %1056 = vmatprep.subr.mxu0 0.0
  %1057 = vmatpush1.msra.mxu0 %v1050
  %1058 = vmatprep.subr.mxu0 0.0
  %1059 = vmatpush1.msra.mxu0 %v1051
  %1060 = vmatprep.subr.mxu0 0.0
  %1061 = vmatpush1.msra.mxu0 0.0
  %1062 = vmatprep.subr.mxu0 0.0
  %1063 = vmatpush1.msra.mxu0 0.0
  %1064 = vmatprep.subr.mxu0 0.0
  %1065 = vmatpush1.msra.mxu0 0.0
  %1066 = vmatprep.subr.mxu0 0.0
  %1067 = vmatpush1.msra.mxu0 0.0
  %1068 = vmatprep.subr.mxu0 0.0
  %1069 = vmatpush1.msra.mxu0 0.0
  %1070 = vmatprep.subr.mxu0 0.0
  %1071 = vmatpush1.msra.mxu0 0.0
  %1072 = vmatprep.subr.mxu0 0.0
  %1073 = vmatpush1.msra.mxu0 0.0
  %1074 = vmatprep.subr.mxu0 0.0
  %1075 = vmatpush1.msra.mxu0 0.0
  %1076 = vmatprep.subr.mxu0 0.0
  %1077 = vmatpush1.msra.mxu0 0.0
  %1078 = vmatprep.subr.mxu0 0.0
  %1079 = vmatpush1.msra.mxu0 0.0
  %1080 = vmatprep.subr.mxu0 0.0
  %1081 = vmatpush1.msra.mxu0 0.0
  %1082 = vmatprep.subr.mxu0 0.0
  %1083 = vmatpush1.msra.mxu0 0.0
  %1084 = vmatprep.subr.mxu0 0.0
  %1085 = vmatpush1.msra.mxu0 0.0
  %1086 = vmatprep.subr.mxu0 0.0
  %1087 = vmatpush1.msra.mxu0 0.0
  %1088 = vmatprep.subr.mxu0 0.0
  %1089 = vmatpush1.msra.mxu0 0.0
  %1090 = vmatprep.subr.mxu0 0.0
  %1091 = vmatpush1.msra.mxu0 0.0
  %1092 = vmatprep.subr.mxu0 0.0
  %1093 = vmatpush1.msra.mxu0 0.0
  %1094 = vmatprep.subr.mxu0 0.0
  %1095 = vmatpush1.msra.mxu0 0.0
  %1096 = vmatprep.subr.mxu0 0.0
  %1097 = vmatpush1.msra.mxu0 0.0
  %1098 = vmatprep.subr.mxu0 0.0
  %1099 = vmatpush1.msra.mxu0 0.0
  %1100 = vmatprep.subr.mxu0 0.0
  %1101 = vmatpush1.msra.mxu0 0.0
  %1102 = vmatprep.subr.mxu0 0.0
  %1103 = vmatpush1.msra.mxu0 0.0
  %1104 = vmatprep.subr.mxu0 0.0
  %1105 = vmatpush1.msra.mxu0 0.0
  %1106 = vmatprep.subr.mxu0 0.0
  %1107 = vmatpush1.msra.mxu0 0.0
  %1108 = vmatprep.subr.mxu0 0.0
  %1109 = vmatpush1.msra.mxu0 0.0
  %1110 = vmatprep.subr.mxu0 0.0
  %1111 = vmatpush1.msra.mxu0 0.0
  %1112 = vmatprep.subr.mxu0 0.0
  %1113 = vmatpush1.msra.mxu0 0.0
  %1114 = vmatprep.subr.mxu0 0.0
  %1115 = vmatpush1.msra.mxu0 0.0
  %1116 = vmatprep.subr.mxu0 0.0
  %1117 = vmatpush1.msra.mxu0 0.0
  %1118 = vmatprep.subr.mxu0 0.0
  %1119 = vmatpush1.msra.mxu0 0.0
  %1120 = vmatprep.mubr.f32.mxu0 0.0
  %1121 = vmatmul.mubr.f32.gmra.mrb[0].mxu0 %v1054
  %v1122 = vpop.f32.mrb[0].mxu0
  %v1123 = vadd.f32 0.0, %v1122
  %v1124 = vpop.f32.mrb[0].mxu0
  %1125 = vdwg.mxu0
  %v1126 = vld [vmem:[%s15] sm:$0xff]
  %v1127 = vld [vmem:[%s15 + $0x8] sm:$0xff]
  %v1128 = vld [vmem:[%s15 + $0x10] sm:$0xff]
  %v1129 = vld [vmem:[%s15 + $0x18] sm:$0xff]
  %v1130 = vld [vmem:[%s15 + $0x20] sm:$0xff]
  %v1131 = vld [vmem:[%s15 + $0x28] sm:$0xff]
  %v1132 = vld [vmem:[%s15 + $0x30] sm:$0xff]
  %v1133 = vld [vmem:[%s15 + $0x38] sm:$0xff]
  %v1134 = vld [vmem:[%s15 + $0x40] sm:$0xff]
  %v1135 = vld [vmem:[%s15 + $0x48] sm:$0xff]
  %v1136 = vld [vmem:[%s15 + $0x50] sm:$0xff]
  %v1137 = vld [vmem:[%s15 + $0x58] sm:$0xff]
  %v1138 = vld [vmem:[%s15 + $0x60] sm:$0xff]
  %v1139 = vld [vmem:[%s15 + $0x68] sm:$0xff]
  %v1140 = vld [vmem:[%s15 + $0x70] sm:$0xff]
  %v1141 = vld [vmem:[%s15 + $0x78] sm:$0xff]
  %v1142 = vld [vmem:[%s16] sm:$0x1]
  %v1144 = vlaneseq
  %v1145 = vshrl.u32 %v1144, 7
  %v1146 = vsub.s32 0, %v1145
  %v1147 = vrot.slane %v1142, %v1146
  %1149 = vmatprep.subr.mxu0 0.0
  %1150 = vmatpush1.msra.mxu0 %v1126
  %1151 = vmatprep.subr.mxu0 0.0
  %1152 = vmatpush1.msra.mxu0 %v1127
  %1153 = vmatprep.subr.mxu0 0.0
  %1154 = vmatpush1.msra.mxu0 %v1128
  %1155 = vmatprep.subr.mxu0 0.0
  %1156 = vmatpush1.msra.mxu0 %v1129
  %1157 = vmatprep.subr.mxu0 0.0
  %1158 = vmatpush1.msra.mxu0 %v1130
  %1159 = vmatprep.subr.mxu0 0.0
  %1160 = vmatpush1.msra.mxu0 %v1131
  %1161 = vmatprep.subr.mxu0 0.0
  %1162 = vmatpush1.msra.mxu0 %v1132
  %1163 = vmatprep.subr.mxu0 0.0
  %1164 = vmatpush1.msra.mxu0 %v1133
  %1165 = vmatprep.subr.mxu0 0.0
  %1166 = vmatpush1.msra.mxu0 %v1134
  %1167 = vmatprep.subr.mxu0 0.0
  %1168 = vmatpush1.msra.mxu0 %v1135
  %1169 = vmatprep.subr.mxu0 0.0
  %1170 = vmatpush1.msra.mxu0 %v1136
  %1171 = vmatprep.subr.mxu0 0.0
  %1172 = vmatpush1.msra.mxu0 %v1137
  %1173 = vmatprep.subr.mxu0 0.0
  %1174 = vmatpush1.msra.mxu0 %v1138
  %1175 = vmatprep.subr.mxu0 0.0
  %1176 = vmatpush1.msra.mxu0 %v1139
  %1177 = vmatprep.subr.mxu0 0.0
  %1178 = vmatpush1.msra.mxu0 %v1140
  %1179 = vmatprep.subr.mxu0 0.0
  %1180 = vmatpush1.msra.mxu0 %v1141
  %1181 = vmatprep.subr.mxu0 0.0
  %1182 = vmatpush1.msra.mxu0 0.0
  %1183 = vmatprep.subr.mxu0 0.0
  %1184 = vmatpush1.msra.mxu0 0.0
  %1185 = vmatprep.subr.mxu0 0.0
  %1186 = vmatpush1.msra.mxu0 0.0
  %1187 = vmatprep.subr.mxu0 0.0
  %1188 = vmatpush1.msra.mxu0 0.0
  %1189 = vmatprep.subr.mxu0 0.0
  %1190 = vmatpush1.msra.mxu0 0.0
  %1191 = vmatprep.subr.mxu0 0.0
  %1192 = vmatpush1.msra.mxu0 0.0
  %1193 = vmatprep.subr.mxu0 0.0
  %1194 = vmatpush1.msra.mxu0 0.0
  %1195 = vmatprep.subr.mxu0 0.0
  %1196 = vmatpush1.msra.mxu0 0.0
  %1197 = vmatprep.subr.mxu0 0.0
  %1198 = vmatpush1.msra.mxu0 0.0
  %1199 = vmatprep.subr.mxu0 0.0
  %1200 = vmatpush1.msra.mxu0 0.0
  %1201 = vmatprep.subr.mxu0 0.0
  %1202 = vmatpush1.msra.mxu0 0.0
  %1203 = vmatprep.subr.mxu0 0.0
  %1204 = vmatpush1.msra.mxu0 0.0
  %1205 = vmatprep.subr.mxu0 0.0
  %1206 = vmatpush1.msra.mxu0 0.0
  %1207 = vmatprep.subr.mxu0 0.0
  %1208 = vmatpush1.msra.mxu0 0.0
  %1209 = vmatprep.subr.mxu0 0.0
  %1210 = vmatpush1.msra.mxu0 0.0
  %1211 = vmatprep.subr.mxu0 0.0
  %1212 = vmatpush1.msra.mxu0 0.0
  %1213 = vmatprep.mubr.f32.mxu0 0.0
  %1214 = vmatmul.mubr.f32.gmra.mrb[0].mxu0 %v1123
  %v1215 = vpop.f32.mrb[0].mxu0
  %v1216 = vadd.f32 %v1147, %v1215
  %v1217 = vpop.f32.mrb[0].mxu0
  %1218 = vdwg.mxu0
  %v1219 = vmax.f32 %v1216, 0.0
  %v1220 = vld [vmem:[%s17] sm:$0x1]
  %v1222 = vlaneseq
  %v1223 = vshrl.u32 %v1222, 7
  %v1224 = vsub.s32 0, %v1223
  %v1225 = vrot.slane %v1220, %v1224
  %v1227 = vmul.f32 %v1219, %v1225
  %1228 = vadd.xlane.f32.xlu0 %v1227
  %v1229 = vpop.xlane.xlu0 %1228
  %v1230 = vld [vmem:[%s18] sm:$0x1]
  %v1232 = vlaneseq
  %v1233 = vshrl.u32 %v1232, 7
  %v1234 = vsub.s32 0, %v1233
  %v1235 = vrot.slane %v1230, %v1234
  %v1237 = vadd.f32 %v1229, %v1235
  %1238 = vst [vmem:[%s19] sm:$0xff] %v1237
  // Predicated region
  $region78: #{gcn_net_forward.1} parent=0 // pred_check
    _
  $region79: #{gcn_net_forward.1} parent=0 // pred_check_branch
    %1240 = sbr.rel (0) target = $region81
  $region80: #{gcn_net_forward.1} parent=0 // pred_region
    _
  $region81: #{gcn_net_forward.1} parent=0 // pred_fallthru
    _
  // Predicated region
  $region82: #{gcn_net_forward.1} parent=0 // pred_check
    _
  $region83: #{gcn_net_forward.1} parent=0 // pred_check_branch
    %1242 = sbr.rel (0) target = $region85
  $region84: #{gcn_net_forward.1} parent=0 // pred_region
    _
  $region85: #{gcn_net_forward.1} parent=0 // pred_fallthru
    _

</llo_original>
